<compile_context>
chip_gen: v7x
topology: tpu7x:2x2x1
jax: 0.10.0
libtpu: 0.0.40
codegen_flags: <defaults>
</compile_context>

<pallas_src>
import functools

import jax
import jax.numpy as jnp
import numpy as np
from jax.experimental import pallas as pl
from jax.experimental.pallas import tpu as pltpu

# ----- config (mirrors cfg.model.*) -----
IN_CHANNELS = 4
RESIDUAL_CHANNELS = 16
SKIP_CHANNELS = 16
KERNEL_SIZE = 2
NUM_BLOCKS = 2
NUM_LAYERS = 3          # dilations 1, 2, 4 per block

PACKED_ORDER = ["w_init", "b_init", "w_fg", "b_fg", "w_rs", "b_rs",
                "w_fc1", "b_fc1", "w_fc2", "b_fc2"]


# ----------------------------- Pallas kernel ------------------------------
def wavenet_kernel(x_ref,
                   w_init_ref, b_init_ref,
                   w_fg_ref, b_fg_ref,
                   w_rs_ref, b_rs_ref,
                   w_fc1_ref, b_fc1_ref,
                   w_fc2_ref, b_fc2_ref,
                   out_ref,
                   *, num_blocks, num_layers, kernel_size):
    # x_ref: (Cin, T)  -- channels in sublanes, time in lanes (one batch element)
    R = w_rs_ref.shape[2]          # residual channels (contraction dim of w_rs^T)
    T = x_ref.shape[-1]
    bf16 = jnp.bfloat16

    x = x_ref[...].astype(bf16)                                       # (Cin, T)
    h = jnp.dot(w_init_ref[...], x,
                preferred_element_type=jnp.float32) + b_init_ref[...]  # (R, T) f32

    # Hoisted lane (time) index + causal masks for the distinct nonzero offsets.
    t_idx = jax.lax.broadcasted_iota(jnp.int32, (1, T), 1)
    offsets = sorted({(kernel_size - 1 - j) * (2 ** n)
                      for n in range(num_layers)
                      for j in range(kernel_size)} - {0})
    masks = {off: (t_idx >= off) for off in offsets}

    def causal_shift(a, off):
        # a[:, t] <- a[:, t-off], zero for t < off (lane roll + hoisted mask).
        if off == 0:
            return a
        rolled = pltpu.roll(a, shift=off, axis=1)
        return jnp.where(masks[off], rolled, 0.0)

    skip_sum = jnp.zeros((w_rs_ref.shape[1] - R, T), jnp.float32)     # (S, T)

    # NOTE: the 6-layer loop is a static unroll; every per-layer temporary is
    # last-used inside its own iteration so live ranges stay bounded.
    layer = 0
    for _ in range(num_blocks):
        for n in range(num_layers):
            dilation = 2 ** n
            # fused [filter | gate] as a sum of K small dots (no lane concat)
            acc = None
            for j in range(kernel_size):
                off = (kernel_size - 1 - j) * dilation
                tap = causal_shift(h, off).astype(bf16)               # (R, T)
                contrib = jnp.dot(w_fg_ref[layer, j], tap,
                                  preferred_element_type=jnp.float32)  # (2R, T)
                acc = contrib if acc is None else acc + contrib
            fg = acc + b_fg_ref[layer]                                 # (2R, T)
            f = fg[:R]
            g = fg[R:]
            # sigmoid(g) == 0.5*(1 + tanh(0.5*g)): 1 EUP push instead of 2
            z = jnp.tanh(f) * (0.5 * (jnp.tanh(0.5 * g) + 1.0))        # (R, T)
            # fused [residual | skip]
            rs = jnp.dot(w_rs_ref[layer], z.astype(bf16),
                         preferred_element_type=jnp.float32) + b_rs_ref[layer]
            h = h + rs[:R]
            skip_sum = skip_sum + rs[R:]
            layer += 1

    s = jnp.maximum(skip_sum, 0.0)
    s = jnp.dot(w_fc1_ref[...], s.astype(bf16),
                preferred_element_type=jnp.float32) + b_fc1_ref[...]
    s = jnp.maximum(s, 0.0)
    out = jnp.dot(w_fc2_ref[...], s.astype(bf16),
                  preferred_element_type=jnp.float32) + b_fc2_ref[...]  # (Cin, T)
    out_ref[...] = out.astype(out_ref.dtype)


# --------------------------- weight packing --------------------------------
def pack_params(params):
    """Fuse filter|gate and residual|skip weights, pre-transpose to the
    channels-in-sublanes layout (out, in), cast matmul weights to bf16."""
    L = NUM_BLOCKS * NUM_LAYERS
    K, R = KERNEL_SIZE, RESIDUAL_CHANNELS
    bf16 = jnp.bfloat16
    w_filt = params["w_filt"].reshape(L, K, R, R)                 # (L,K,R_in,R_out)
    w_gate = params["w_gate"].reshape(L, K, R, R)
    w_fg = jnp.concatenate([w_filt, w_gate], axis=-1)             # (L,K,R_in,2R_out)
    w_fg = jnp.swapaxes(w_fg, -1, -2)                             # (L,K,2R_out,R_in)
    w_rs = jnp.concatenate([params["w_res"], params["w_skip"]], axis=-1)
    w_rs = jnp.swapaxes(w_rs, -1, -2)                             # (L, R+S, R_in)
    return {
        "w_init": params["w_init"].T.astype(bf16),                # (R, Cin)
        "b_init": params["b_init"].reshape(-1, 1),                # (R, 1)
        "w_fg":   w_fg.astype(bf16),
        "b_fg":   jnp.concatenate([params["b_filt"], params["b_gate"]],
                                  axis=-1)[..., None],            # (L, 2R, 1)
        "w_rs":   w_rs.astype(bf16),
        "b_rs":   jnp.concatenate([params["b_res"], params["b_skip"]],
                                  axis=-1)[..., None],            # (L, R+S, 1)
        "w_fc1":  params["w_fc1"].T.astype(bf16),                 # (S, S)
        "b_fc1":  params["b_fc1"].reshape(-1, 1),                 # (S, 1)
        "w_fc2":  params["w_fc2"].T.astype(bf16),                 # (Cin, S)
        "b_fc2":  params["b_fc2"].reshape(-1, 1),                 # (Cin, 1)
    }


# ------------------------------- wrapper ------------------------------------
def wavenet_forward(x_nct, params):
    """x_nct: (B, Cin, T) float32, native PyTorch NCL. Returns (B, Cin, T)."""
    B, Cin, T = x_nct.shape
    packed = pack_params(params)
    weights = [packed[k] for k in PACKED_ORDER]

    def full_spec(a):
        nd = a.ndim
        return pl.BlockSpec(a.shape, lambda b, _nd=nd: (0,) * _nd)

    kernel = functools.partial(
        wavenet_kernel, num_blocks=NUM_BLOCKS, num_layers=NUM_LAYERS,
        kernel_size=KERNEL_SIZE)

    L = NUM_BLOCKS * NUM_LAYERS
    R, S, K = RESIDUAL_CHANNELS, SKIP_CHANNELS, KERNEL_SIZE
    flops = int(2 * B * T * (Cin * R + L * (K * R * 2 * R + R * (R + S))
                             + S * S + S * Cin))
    transcendentals = int(B * T * L * 2 * R)
    bytes_accessed = int(
        x_nct.size * x_nct.dtype.itemsize            # input
        + B * Cin * T * 4                            # output
        + sum(int(np.prod(w.shape)) * w.dtype.itemsize for w in weights))

    out = pl.pallas_call(
        kernel,
        out_shape=jax.ShapeDtypeStruct((B, Cin, T), x_nct.dtype),
        grid=(B,),
        in_specs=[pl.BlockSpec((None, Cin, T), lambda b: (b, 0, 0))] +
                 [full_spec(w) for w in weights],
        out_specs=pl.BlockSpec((None, Cin, T), lambda b: (b, 0, 0)),
        compiler_params=pltpu.CompilerParams(
            dimension_semantics=("parallel",)),
        cost_estimate=pl.CostEstimate(flops=flops,
                                      transcendentals=transcendentals,
                                      bytes_accessed=bytes_accessed),
    )(x_nct, *weights)
    return out


# ----- deterministic parameter init (natural / unpacked layout) -----
def init_params(key):
    L = NUM_BLOCKS * NUM_LAYERS
    R, S, Cin, K = RESIDUAL_CHANNELS, SKIP_CHANNELS, IN_CHANNELS, KERNEL_SIZE
    ks = jax.random.split(key, 14)
    f32 = jnp.float32
    n = lambda k, shp, s: jax.random.normal(k, shp, f32) * s
    return {
        "w_init": n(ks[0], (Cin, R), 0.3),
        "b_init": n(ks[1], (1, R), 0.1),
        "w_filt": n(ks[2], (L * K, R, R), 0.3),
        "b_filt": n(ks[3], (L, R), 0.1),
        "w_gate": n(ks[4], (L * K, R, R), 0.3),
        "b_gate": n(ks[5], (L, R), 0.1),
        "w_res":  n(ks[6], (L, R, R), 0.3),
        "b_res":  n(ks[7], (L, R), 0.1),
        "w_skip": n(ks[8], (L, R, S), 0.3),
        "b_skip": n(ks[9], (L, S), 0.1),
        "w_fc1":  n(ks[10], (S, S), 0.3),
        "b_fc1":  n(ks[11], (1, S), 0.1),
        "w_fc2":  n(ks[12], (S, Cin), 0.3),
        "b_fc2":  n(ks[13], (1, Cin), 0.1),
    }


# ----- pure-JAX reference (same math; matmul precision selectable) -----
def _causal_shift_ref(a, off):
    if off == 0:
        return a
    zeros = jnp.zeros((off, a.shape[1]), a.dtype)
    return jnp.concatenate([zeros, a[: a.shape[0] - off, :]], axis=0)


def _mm(a, w, dot_dtype):
    return jnp.dot(a.astype(dot_dtype), w.astype(dot_dtype),
                   preferred_element_type=jnp.float32)


def _ref_single(x_tc, p, dot_dtype):
    h = _mm(x_tc, p["w_init"], dot_dtype) + p["b_init"][0]
    skip_sum = jnp.zeros((x_tc.shape[0], p["w_skip"].shape[2]), jnp.float32)
    layer = 0
    for _ in range(NUM_BLOCKS):
        for n in range(NUM_LAYERS):
            d = 2 ** n
            filt = jnp.zeros_like(h)
            gate = jnp.zeros_like(h)
            for j in range(KERNEL_SIZE):
                off = (KERNEL_SIZE - 1 - j) * d
                h_sh = _causal_shift_ref(h, off)
                filt = filt + _mm(h_sh, p["w_filt"][layer * KERNEL_SIZE + j], dot_dtype)
                gate = gate + _mm(h_sh, p["w_gate"][layer * KERNEL_SIZE + j], dot_dtype)
            filt = filt + p["b_filt"][layer]
            gate = gate + p["b_gate"][layer]
            z = jnp.tanh(filt) * jax.nn.sigmoid(gate)
            skip_sum = skip_sum + _mm(z, p["w_skip"][layer], dot_dtype) + p["b_skip"][layer]
            h = h + _mm(z, p["w_res"][layer], dot_dtype) + p["b_res"][layer]
            layer += 1
    s = jnp.maximum(skip_sum, 0.0)
    s = jnp.maximum(_mm(s, p["w_fc1"], dot_dtype) + p["b_fc1"][0], 0.0)
    return _mm(s, p["w_fc2"], dot_dtype) + p["b_fc2"][0]


def wavenet_reference(x_nct, params, dot_dtype=jnp.float32):
    x = jnp.transpose(x_nct, (0, 2, 1)).astype(jnp.float32)
    out = jax.vmap(lambda xt: _ref_single(xt, params, dot_dtype))(x)
    return jnp.transpose(out, (0, 2, 1))


if __name__ == "__main__":
    key = jax.random.PRNGKey(0)
    pkey, xkey = jax.random.split(key)
    params = init_params(pkey)

    B, T = 2, 16
    x = jax.random.normal(xkey, (B, IN_CHANNELS, T), jnp.float32)

    out = wavenet_forward(x, params)
    jax.block_until_ready(out)
    assert out.shape == (B, IN_CHANNELS, T)

    # Reference uses the same bf16-operand / f32-accumulate matmul precision as
    # the kernel (the only deviation from the pure-f32 PyTorch math).
    ref = wavenet_reference(x, params, dot_dtype=jnp.bfloat16)
    np.testing.assert_allclose(np.asarray(out), np.asarray(ref), rtol=2e-3, atol=2e-3)
    print("KERNEL_OK")
</pallas_src>

<mosaic_0001>
module attributes {stable_mosaic.version = 11 : i64} {
  func.func @wavenet_kernel(%arg0: i32, %arg1: memref<1x4x16xf32, #tpu.memory_space<vmem>>, %arg2: memref<16x4xbf16, #tpu.memory_space<vmem>>, %arg3: memref<16x1xf32, #tpu.memory_space<vmem>>, %arg4: memref<6x2x32x16xbf16, #tpu.memory_space<vmem>>, %arg5: memref<6x32x1xf32, #tpu.memory_space<vmem>>, %arg6: memref<6x32x16xbf16, #tpu.memory_space<vmem>>, %arg7: memref<6x32x1xf32, #tpu.memory_space<vmem>>, %arg8: memref<16x16xbf16, #tpu.memory_space<vmem>>, %arg9: memref<16x1xf32, #tpu.memory_space<vmem>>, %arg10: memref<4x16xbf16, #tpu.memory_space<vmem>>, %arg11: memref<4x1xf32, #tpu.memory_space<vmem>>, %arg12: memref<1x4x16xf32, #tpu.memory_space<vmem>>) attributes {dimension_semantics = [#tpu.dimension_semantics<parallel>], iteration_bounds = array<i64: 2>, scalar_prefetch = 0 : i64, scratch_operands = 0 : i64, tpu.core_type = #tpu.core_type<tc>, window_params = [{transform_indices = @transform_0, window_bounds = array<i64: 1, 4, 16>}, {pipeline_mode = #tpu.pipeline_mode<synchronous>, transform_indices = @transform_1, window_bounds = array<i64: 16, 4>}, {pipeline_mode = #tpu.pipeline_mode<synchronous>, transform_indices = @transform_2, window_bounds = array<i64: 16, 1>}, {pipeline_mode = #tpu.pipeline_mode<synchronous>, transform_indices = @transform_3, window_bounds = array<i64: 6, 2, 32, 16>}, {pipeline_mode = #tpu.pipeline_mode<synchronous>, transform_indices = @transform_4, window_bounds = array<i64: 6, 32, 1>}, {pipeline_mode = #tpu.pipeline_mode<synchronous>, transform_indices = @transform_5, window_bounds = array<i64: 6, 32, 16>}, {pipeline_mode = #tpu.pipeline_mode<synchronous>, transform_indices = @transform_6, window_bounds = array<i64: 6, 32, 1>}, {pipeline_mode = #tpu.pipeline_mode<synchronous>, transform_indices = @transform_7, window_bounds = array<i64: 16, 16>}, {pipeline_mode = #tpu.pipeline_mode<synchronous>, transform_indices = @transform_8, window_bounds = array<i64: 16, 1>}, {pipeline_mode = #tpu.pipeline_mode<synchronous>, transform_indices = @transform_9, window_bounds = array<i64: 4, 16>}, {pipeline_mode = #tpu.pipeline_mode<synchronous>, transform_indices = @transform_10, window_bounds = array<i64: 4, 1>}, {transform_indices = @transform_11, window_bounds = array<i64: 1, 4, 16>}]} {
    %c0 = arith.constant 0 : index
    %c0_0 = arith.constant 0 : index
    %c0_1 = arith.constant 0 : index
    %0 = vector.load %arg1[%c0, %c0_0, %c0_1] : memref<1x4x16xf32, #tpu.memory_space<vmem>>, vector<1x4x16xf32>
    %1 = vector.shape_cast %0 : vector<1x4x16xf32> to vector<4x16xf32>
    %2 = arith.truncf %1 : vector<4x16xf32> to vector<4x16xbf16>
    %c0_2 = arith.constant 0 : index
    %c0_3 = arith.constant 0 : index
    %3 = vector.load %arg2[%c0_2, %c0_3] : memref<16x4xbf16, #tpu.memory_space<vmem>>, vector<16x4xbf16>
    %cst = arith.constant dense<0.000000e+00> : vector<16x16xf32>
    %4 = tpu.matmul %3, %2, %cst {dimension_numbers = #tpu.dot_dimension_numbers<[1], [0], [0], [1], [0, 0, 1, 1], [], []>} : vector<16x4xbf16>, vector<4x16xbf16>, vector<16x16xf32> -> vector<16x16xf32>
    %c0_4 = arith.constant 0 : index
    %c0_5 = arith.constant 0 : index
    %5 = vector.load %arg3[%c0_4, %c0_5] : memref<16x1xf32, #tpu.memory_space<vmem>>, vector<16x1xf32>
    %6 = vector.broadcast %5 : vector<16x1xf32> to vector<16x16xf32>
    %7 = arith.addf %4, %6 : vector<16x16xf32>
    %8 = tpu.iota {dimensions = array<i32: 1>} : vector<1x16xi32>
    %c1_i32 = arith.constant 1 : i32
    %9 = vector.broadcast %c1_i32 : i32 to vector<1x16xi32>
    %10 = arith.cmpi sge, %8, %9 : vector<1x16xi32>
    %c2_i32 = arith.constant 2 : i32
    %11 = vector.broadcast %c2_i32 : i32 to vector<1x16xi32>
    %12 = arith.cmpi sge, %8, %11 : vector<1x16xi32>
    %c4_i32 = arith.constant 4 : i32
    %13 = vector.broadcast %c4_i32 : i32 to vector<1x16xi32>
    %14 = arith.cmpi sge, %8, %13 : vector<1x16xi32>
    %cst_6 = arith.constant 0.000000e+00 : f32
    %15 = vector.broadcast %cst_6 : f32 to vector<16x16xf32>
    %c1_i32_7 = arith.constant 1 : i32
    %16 = tpu.dynamic_rotate %7 by %c1_i32_7 dim 1 : vector<16x16xf32>, i32 -> vector<16x16xf32>
    %cst_8 = arith.constant 0.000000e+00 : f32
    %17 = vector.shape_cast %10 : vector<1x16xi1> to vector<1x16xi1>
    %18 = vector.broadcast %17 : vector<1x16xi1> to vector<16x16xi1>
    %19 = vector.broadcast %cst_8 : f32 to vector<16x16xf32>
    %20 = arith.select %18, %16, %19 : vector<16x16xi1>, vector<16x16xf32>
    %21 = arith.truncf %20 : vector<16x16xf32> to vector<16x16xbf16>
    %c0_9 = arith.constant 0 : index
    %c0_10 = arith.constant 0 : index
    %c0_11 = arith.constant 0 : index
    %c0_12 = arith.constant 0 : index
    %22 = vector.load %arg4[%c0_9, %c0_10, %c0_11, %c0_12] : memref<6x2x32x16xbf16, #tpu.memory_space<vmem>>, vector<1x1x32x16xbf16>
    %23 = vector.shape_cast %22 : vector<1x1x32x16xbf16> to vector<32x16xbf16>
    %cst_13 = arith.constant dense<0.000000e+00> : vector<32x16xf32>
    %24 = tpu.matmul %23, %21, %cst_13 {dimension_numbers = #tpu.dot_dimension_numbers<[1], [0], [0], [1], [0, 0, 1, 1], [], []>} : vector<32x16xbf16>, vector<16x16xbf16>, vector<32x16xf32> -> vector<32x16xf32>
    %25 = arith.truncf %7 : vector<16x16xf32> to vector<16x16xbf16>
    %c0_14 = arith.constant 0 : index
    %c1 = arith.constant 1 : index
    %c0_15 = arith.constant 0 : index
    %c0_16 = arith.constant 0 : index
    %26 = vector.load %arg4[%c0_14, %c1, %c0_15, %c0_16] : memref<6x2x32x16xbf16, #tpu.memory_space<vmem>>, vector<1x1x32x16xbf16>
    %27 = vector.shape_cast %26 : vector<1x1x32x16xbf16> to vector<32x16xbf16>
    %cst_17 = arith.constant dense<0.000000e+00> : vector<32x16xf32>
    %28 = tpu.matmul %27, %25, %cst_17 {dimension_numbers = #tpu.dot_dimension_numbers<[1], [0], [0], [1], [0, 0, 1, 1], [], []>} : vector<32x16xbf16>, vector<16x16xbf16>, vector<32x16xf32> -> vector<32x16xf32>
    %29 = arith.addf %24, %28 : vector<32x16xf32>
    %c0_18 = arith.constant 0 : index
    %c0_19 = arith.constant 0 : index
    %c0_20 = arith.constant 0 : index
    %30 = vector.load %arg5[%c0_18, %c0_19, %c0_20] : memref<6x32x1xf32, #tpu.memory_space<vmem>>, vector<1x32x1xf32>
    %31 = vector.shape_cast %30 : vector<1x32x1xf32> to vector<32x1xf32>
    %32 = vector.broadcast %31 : vector<32x1xf32> to vector<32x16xf32>
    %33 = arith.addf %29, %32 : vector<32x16xf32>
    %34 = vector.extract_strided_slice %33 {offsets = [0, 0], sizes = [16, 16], strides = [1, 1]} : vector<32x16xf32> to vector<16x16xf32>
    %35 = vector.extract_strided_slice %33 {offsets = [16, 0], sizes = [16, 16], strides = [1, 1]} : vector<32x16xf32> to vector<16x16xf32>
    %36 = math.tanh %34 : vector<16x16xf32>
    %cst_21 = arith.constant 5.000000e-01 : f32
    %37 = vector.broadcast %cst_21 : f32 to vector<16x16xf32>
    %38 = arith.mulf %37, %35 : vector<16x16xf32>
    %39 = math.tanh %38 : vector<16x16xf32>
    %cst_22 = arith.constant 1.000000e+00 : f32
    %40 = vector.broadcast %cst_22 : f32 to vector<16x16xf32>
    %41 = arith.addf %39, %40 : vector<16x16xf32>
    %cst_23 = arith.constant 5.000000e-01 : f32
    %42 = vector.broadcast %cst_23 : f32 to vector<16x16xf32>
    %43 = arith.mulf %42, %41 : vector<16x16xf32>
    %44 = arith.mulf %36, %43 : vector<16x16xf32>
    %c0_24 = arith.constant 0 : index
    %c0_25 = arith.constant 0 : index
    %c0_26 = arith.constant 0 : index
    %45 = vector.load %arg6[%c0_24, %c0_25, %c0_26] : memref<6x32x16xbf16, #tpu.memory_space<vmem>>, vector<1x32x16xbf16>
    %46 = vector.shape_cast %45 : vector<1x32x16xbf16> to vector<32x16xbf16>
    %47 = arith.truncf %44 : vector<16x16xf32> to vector<16x16xbf16>
    %cst_27 = arith.constant dense<0.000000e+00> : vector<32x16xf32>
    %48 = tpu.matmul %46, %47, %cst_27 {dimension_numbers = #tpu.dot_dimension_numbers<[1], [0], [0], [1], [0, 0, 1, 1], [], []>} : vector<32x16xbf16>, vector<16x16xbf16>, vector<32x16xf32> -> vector<32x16xf32>
    %c0_28 = arith.constant 0 : index
    %c0_29 = arith.constant 0 : index
    %c0_30 = arith.constant 0 : index
    %49 = vector.load %arg7[%c0_28, %c0_29, %c0_30] : memref<6x32x1xf32, #tpu.memory_space<vmem>>, vector<1x32x1xf32>
    %50 = vector.shape_cast %49 : vector<1x32x1xf32> to vector<32x1xf32>
    %51 = vector.broadcast %50 : vector<32x1xf32> to vector<32x16xf32>
    %52 = arith.addf %48, %51 : vector<32x16xf32>
    %53 = vector.extract_strided_slice %52 {offsets = [0, 0], sizes = [16, 16], strides = [1, 1]} : vector<32x16xf32> to vector<16x16xf32>
    %54 = arith.addf %7, %53 : vector<16x16xf32>
    %55 = vector.extract_strided_slice %52 {offsets = [16, 0], sizes = [16, 16], strides = [1, 1]} : vector<32x16xf32> to vector<16x16xf32>
    %56 = arith.addf %15, %55 : vector<16x16xf32>
    %c2_i32_31 = arith.constant 2 : i32
    %57 = tpu.dynamic_rotate %54 by %c2_i32_31 dim 1 : vector<16x16xf32>, i32 -> vector<16x16xf32>
    %cst_32 = arith.constant 0.000000e+00 : f32
    %58 = vector.shape_cast %12 : vector<1x16xi1> to vector<1x16xi1>
    %59 = vector.broadcast %58 : vector<1x16xi1> to vector<16x16xi1>
    %60 = vector.broadcast %cst_32 : f32 to vector<16x16xf32>
    %61 = arith.select %59, %57, %60 : vector<16x16xi1>, vector<16x16xf32>
    %62 = arith.truncf %61 : vector<16x16xf32> to vector<16x16xbf16>
    %c1_33 = arith.constant 1 : index
    %c0_34 = arith.constant 0 : index
    %c0_35 = arith.constant 0 : index
    %c0_36 = arith.constant 0 : index
    %63 = vector.load %arg4[%c1_33, %c0_34, %c0_35, %c0_36] : memref<6x2x32x16xbf16, #tpu.memory_space<vmem>>, vector<1x1x32x16xbf16>
    %64 = vector.shape_cast %63 : vector<1x1x32x16xbf16> to vector<32x16xbf16>
    %cst_37 = arith.constant dense<0.000000e+00> : vector<32x16xf32>
    %65 = tpu.matmul %64, %62, %cst_37 {dimension_numbers = #tpu.dot_dimension_numbers<[1], [0], [0], [1], [0, 0, 1, 1], [], []>} : vector<32x16xbf16>, vector<16x16xbf16>, vector<32x16xf32> -> vector<32x16xf32>
    %66 = arith.truncf %54 : vector<16x16xf32> to vector<16x16xbf16>
    %c1_38 = arith.constant 1 : index
    %c1_39 = arith.constant 1 : index
    %c0_40 = arith.constant 0 : index
    %c0_41 = arith.constant 0 : index
    %67 = vector.load %arg4[%c1_38, %c1_39, %c0_40, %c0_41] : memref<6x2x32x16xbf16, #tpu.memory_space<vmem>>, vector<1x1x32x16xbf16>
    %68 = vector.shape_cast %67 : vector<1x1x32x16xbf16> to vector<32x16xbf16>
    %cst_42 = arith.constant dense<0.000000e+00> : vector<32x16xf32>
    %69 = tpu.matmul %68, %66, %cst_42 {dimension_numbers = #tpu.dot_dimension_numbers<[1], [0], [0], [1], [0, 0, 1, 1], [], []>} : vector<32x16xbf16>, vector<16x16xbf16>, vector<32x16xf32> -> vector<32x16xf32>
    %70 = arith.addf %65, %69 : vector<32x16xf32>
    %c1_43 = arith.constant 1 : index
    %c0_44 = arith.constant 0 : index
    %c0_45 = arith.constant 0 : index
    %71 = vector.load %arg5[%c1_43, %c0_44, %c0_45] : memref<6x32x1xf32, #tpu.memory_space<vmem>>, vector<1x32x1xf32>
    %72 = vector.shape_cast %71 : vector<1x32x1xf32> to vector<32x1xf32>
    %73 = vector.broadcast %72 : vector<32x1xf32> to vector<32x16xf32>
    %74 = arith.addf %70, %73 : vector<32x16xf32>
    %75 = vector.extract_strided_slice %74 {offsets = [0, 0], sizes = [16, 16], strides = [1, 1]} : vector<32x16xf32> to vector<16x16xf32>
    %76 = vector.extract_strided_slice %74 {offsets = [16, 0], sizes = [16, 16], strides = [1, 1]} : vector<32x16xf32> to vector<16x16xf32>
    %77 = math.tanh %75 : vector<16x16xf32>
    %cst_46 = arith.constant 5.000000e-01 : f32
    %78 = vector.broadcast %cst_46 : f32 to vector<16x16xf32>
    %79 = arith.mulf %78, %76 : vector<16x16xf32>
    %80 = math.tanh %79 : vector<16x16xf32>
    %cst_47 = arith.constant 1.000000e+00 : f32
    %81 = vector.broadcast %cst_47 : f32 to vector<16x16xf32>
    %82 = arith.addf %80, %81 : vector<16x16xf32>
    %cst_48 = arith.constant 5.000000e-01 : f32
    %83 = vector.broadcast %cst_48 : f32 to vector<16x16xf32>
    %84 = arith.mulf %83, %82 : vector<16x16xf32>
    %85 = arith.mulf %77, %84 : vector<16x16xf32>
    %c1_49 = arith.constant 1 : index
    %c0_50 = arith.constant 0 : index
    %c0_51 = arith.constant 0 : index
    %86 = vector.load %arg6[%c1_49, %c0_50, %c0_51] : memref<6x32x16xbf16, #tpu.memory_space<vmem>>, vector<1x32x16xbf16>
    %87 = vector.shape_cast %86 : vector<1x32x16xbf16> to vector<32x16xbf16>
    %88 = arith.truncf %85 : vector<16x16xf32> to vector<16x16xbf16>
    %cst_52 = arith.constant dense<0.000000e+00> : vector<32x16xf32>
    %89 = tpu.matmul %87, %88, %cst_52 {dimension_numbers = #tpu.dot_dimension_numbers<[1], [0], [0], [1], [0, 0, 1, 1], [], []>} : vector<32x16xbf16>, vector<16x16xbf16>, vector<32x16xf32> -> vector<32x16xf32>
    %c1_53 = arith.constant 1 : index
    %c0_54 = arith.constant 0 : index
    %c0_55 = arith.constant 0 : index
    %90 = vector.load %arg7[%c1_53, %c0_54, %c0_55] : memref<6x32x1xf32, #tpu.memory_space<vmem>>, vector<1x32x1xf32>
    %91 = vector.shape_cast %90 : vector<1x32x1xf32> to vector<32x1xf32>
    %92 = vector.broadcast %91 : vector<32x1xf32> to vector<32x16xf32>
    %93 = arith.addf %89, %92 : vector<32x16xf32>
    %94 = vector.extract_strided_slice %93 {offsets = [0, 0], sizes = [16, 16], strides = [1, 1]} : vector<32x16xf32> to vector<16x16xf32>
    %95 = arith.addf %54, %94 : vector<16x16xf32>
    %96 = vector.extract_strided_slice %93 {offsets = [16, 0], sizes = [16, 16], strides = [1, 1]} : vector<32x16xf32> to vector<16x16xf32>
    %97 = arith.addf %56, %96 : vector<16x16xf32>
    %c4_i32_56 = arith.constant 4 : i32
    %98 = tpu.dynamic_rotate %95 by %c4_i32_56 dim 1 : vector<16x16xf32>, i32 -> vector<16x16xf32>
    %cst_57 = arith.constant 0.000000e+00 : f32
    %99 = vector.shape_cast %14 : vector<1x16xi1> to vector<1x16xi1>
    %100 = vector.broadcast %99 : vector<1x16xi1> to vector<16x16xi1>
    %101 = vector.broadcast %cst_57 : f32 to vector<16x16xf32>
    %102 = arith.select %100, %98, %101 : vector<16x16xi1>, vector<16x16xf32>
    %103 = arith.truncf %102 : vector<16x16xf32> to vector<16x16xbf16>
    %c2 = arith.constant 2 : index
    %c0_58 = arith.constant 0 : index
    %c0_59 = arith.constant 0 : index
    %c0_60 = arith.constant 0 : index
    %104 = vector.load %arg4[%c2, %c0_58, %c0_59, %c0_60] : memref<6x2x32x16xbf16, #tpu.memory_space<vmem>>, vector<1x1x32x16xbf16>
    %105 = vector.shape_cast %104 : vector<1x1x32x16xbf16> to vector<32x16xbf16>
    %cst_61 = arith.constant dense<0.000000e+00> : vector<32x16xf32>
    %106 = tpu.matmul %105, %103, %cst_61 {dimension_numbers = #tpu.dot_dimension_numbers<[1], [0], [0], [1], [0, 0, 1, 1], [], []>} : vector<32x16xbf16>, vector<16x16xbf16>, vector<32x16xf32> -> vector<32x16xf32>
    %107 = arith.truncf %95 : vector<16x16xf32> to vector<16x16xbf16>
    %c2_62 = arith.constant 2 : index
    %c1_63 = arith.constant 1 : index
    %c0_64 = arith.constant 0 : index
    %c0_65 = arith.constant 0 : index
    %108 = vector.load %arg4[%c2_62, %c1_63, %c0_64, %c0_65] : memref<6x2x32x16xbf16, #tpu.memory_space<vmem>>, vector<1x1x32x16xbf16>
    %109 = vector.shape_cast %108 : vector<1x1x32x16xbf16> to vector<32x16xbf16>
    %cst_66 = arith.constant dense<0.000000e+00> : vector<32x16xf32>
    %110 = tpu.matmul %109, %107, %cst_66 {dimension_numbers = #tpu.dot_dimension_numbers<[1], [0], [0], [1], [0, 0, 1, 1], [], []>} : vector<32x16xbf16>, vector<16x16xbf16>, vector<32x16xf32> -> vector<32x16xf32>
    %111 = arith.addf %106, %110 : vector<32x16xf32>
    %c2_67 = arith.constant 2 : index
    %c0_68 = arith.constant 0 : index
    %c0_69 = arith.constant 0 : index
    %112 = vector.load %arg5[%c2_67, %c0_68, %c0_69] : memref<6x32x1xf32, #tpu.memory_space<vmem>>, vector<1x32x1xf32>
    %113 = vector.shape_cast %112 : vector<1x32x1xf32> to vector<32x1xf32>
    %114 = vector.broadcast %113 : vector<32x1xf32> to vector<32x16xf32>
    %115 = arith.addf %111, %114 : vector<32x16xf32>
    %116 = vector.extract_strided_slice %115 {offsets = [0, 0], sizes = [16, 16], strides = [1, 1]} : vector<32x16xf32> to vector<16x16xf32>
    %117 = vector.extract_strided_slice %115 {offsets = [16, 0], sizes = [16, 16], strides = [1, 1]} : vector<32x16xf32> to vector<16x16xf32>
    %118 = math.tanh %116 : vector<16x16xf32>
    %cst_70 = arith.constant 5.000000e-01 : f32
    %119 = vector.broadcast %cst_70 : f32 to vector<16x16xf32>
    %120 = arith.mulf %119, %117 : vector<16x16xf32>
    %121 = math.tanh %120 : vector<16x16xf32>
    %cst_71 = arith.constant 1.000000e+00 : f32
    %122 = vector.broadcast %cst_71 : f32 to vector<16x16xf32>
    %123 = arith.addf %121, %122 : vector<16x16xf32>
    %cst_72 = arith.constant 5.000000e-01 : f32
    %124 = vector.broadcast %cst_72 : f32 to vector<16x16xf32>
    %125 = arith.mulf %124, %123 : vector<16x16xf32>
    %126 = arith.mulf %118, %125 : vector<16x16xf32>
    %c2_73 = arith.constant 2 : index
    %c0_74 = arith.constant 0 : index
    %c0_75 = arith.constant 0 : index
    %127 = vector.load %arg6[%c2_73, %c0_74, %c0_75] : memref<6x32x16xbf16, #tpu.memory_space<vmem>>, vector<1x32x16xbf16>
    %128 = vector.shape_cast %127 : vector<1x32x16xbf16> to vector<32x16xbf16>
    %129 = arith.truncf %126 : vector<16x16xf32> to vector<16x16xbf16>
    %cst_76 = arith.constant dense<0.000000e+00> : vector<32x16xf32>
    %130 = tpu.matmul %128, %129, %cst_76 {dimension_numbers = #tpu.dot_dimension_numbers<[1], [0], [0], [1], [0, 0, 1, 1], [], []>} : vector<32x16xbf16>, vector<16x16xbf16>, vector<32x16xf32> -> vector<32x16xf32>
    %c2_77 = arith.constant 2 : index
    %c0_78 = arith.constant 0 : index
    %c0_79 = arith.constant 0 : index
    %131 = vector.load %arg7[%c2_77, %c0_78, %c0_79] : memref<6x32x1xf32, #tpu.memory_space<vmem>>, vector<1x32x1xf32>
    %132 = vector.shape_cast %131 : vector<1x32x1xf32> to vector<32x1xf32>
    %133 = vector.broadcast %132 : vector<32x1xf32> to vector<32x16xf32>
    %134 = arith.addf %130, %133 : vector<32x16xf32>
    %135 = vector.extract_strided_slice %134 {offsets = [0, 0], sizes = [16, 16], strides = [1, 1]} : vector<32x16xf32> to vector<16x16xf32>
    %136 = arith.addf %95, %135 : vector<16x16xf32>
    %137 = vector.extract_strided_slice %134 {offsets = [16, 0], sizes = [16, 16], strides = [1, 1]} : vector<32x16xf32> to vector<16x16xf32>
    %138 = arith.addf %97, %137 : vector<16x16xf32>
    %c1_i32_80 = arith.constant 1 : i32
    %139 = tpu.dynamic_rotate %136 by %c1_i32_80 dim 1 : vector<16x16xf32>, i32 -> vector<16x16xf32>
    %cst_81 = arith.constant 0.000000e+00 : f32
    %140 = vector.shape_cast %10 : vector<1x16xi1> to vector<1x16xi1>
    %141 = vector.broadcast %140 : vector<1x16xi1> to vector<16x16xi1>
    %142 = vector.broadcast %cst_81 : f32 to vector<16x16xf32>
    %143 = arith.select %141, %139, %142 : vector<16x16xi1>, vector<16x16xf32>
    %144 = arith.truncf %143 : vector<16x16xf32> to vector<16x16xbf16>
    %c3 = arith.constant 3 : index
    %c0_82 = arith.constant 0 : index
    %c0_83 = arith.constant 0 : index
    %c0_84 = arith.constant 0 : index
    %145 = vector.load %arg4[%c3, %c0_82, %c0_83, %c0_84] : memref<6x2x32x16xbf16, #tpu.memory_space<vmem>>, vector<1x1x32x16xbf16>
    %146 = vector.shape_cast %145 : vector<1x1x32x16xbf16> to vector<32x16xbf16>
    %cst_85 = arith.constant dense<0.000000e+00> : vector<32x16xf32>
    %147 = tpu.matmul %146, %144, %cst_85 {dimension_numbers = #tpu.dot_dimension_numbers<[1], [0], [0], [1], [0, 0, 1, 1], [], []>} : vector<32x16xbf16>, vector<16x16xbf16>, vector<32x16xf32> -> vector<32x16xf32>
    %148 = arith.truncf %136 : vector<16x16xf32> to vector<16x16xbf16>
    %c3_86 = arith.constant 3 : index
    %c1_87 = arith.constant 1 : index
    %c0_88 = arith.constant 0 : index
    %c0_89 = arith.constant 0 : index
    %149 = vector.load %arg4[%c3_86, %c1_87, %c0_88, %c0_89] : memref<6x2x32x16xbf16, #tpu.memory_space<vmem>>, vector<1x1x32x16xbf16>
    %150 = vector.shape_cast %149 : vector<1x1x32x16xbf16> to vector<32x16xbf16>
    %cst_90 = arith.constant dense<0.000000e+00> : vector<32x16xf32>
    %151 = tpu.matmul %150, %148, %cst_90 {dimension_numbers = #tpu.dot_dimension_numbers<[1], [0], [0], [1], [0, 0, 1, 1], [], []>} : vector<32x16xbf16>, vector<16x16xbf16>, vector<32x16xf32> -> vector<32x16xf32>
    %152 = arith.addf %147, %151 : vector<32x16xf32>
    %c3_91 = arith.constant 3 : index
    %c0_92 = arith.constant 0 : index
    %c0_93 = arith.constant 0 : index
    %153 = vector.load %arg5[%c3_91, %c0_92, %c0_93] : memref<6x32x1xf32, #tpu.memory_space<vmem>>, vector<1x32x1xf32>
    %154 = vector.shape_cast %153 : vector<1x32x1xf32> to vector<32x1xf32>
    %155 = vector.broadcast %154 : vector<32x1xf32> to vector<32x16xf32>
    %156 = arith.addf %152, %155 : vector<32x16xf32>
    %157 = vector.extract_strided_slice %156 {offsets = [0, 0], sizes = [16, 16], strides = [1, 1]} : vector<32x16xf32> to vector<16x16xf32>
    %158 = vector.extract_strided_slice %156 {offsets = [16, 0], sizes = [16, 16], strides = [1, 1]} : vector<32x16xf32> to vector<16x16xf32>
    %159 = math.tanh %157 : vector<16x16xf32>
    %cst_94 = arith.constant 5.000000e-01 : f32
    %160 = vector.broadcast %cst_94 : f32 to vector<16x16xf32>
    %161 = arith.mulf %160, %158 : vector<16x16xf32>
    %162 = math.tanh %161 : vector<16x16xf32>
    %cst_95 = arith.constant 1.000000e+00 : f32
    %163 = vector.broadcast %cst_95 : f32 to vector<16x16xf32>
    %164 = arith.addf %162, %163 : vector<16x16xf32>
    %cst_96 = arith.constant 5.000000e-01 : f32
    %165 = vector.broadcast %cst_96 : f32 to vector<16x16xf32>
    %166 = arith.mulf %165, %164 : vector<16x16xf32>
    %167 = arith.mulf %159, %166 : vector<16x16xf32>
    %c3_97 = arith.constant 3 : index
    %c0_98 = arith.constant 0 : index
    %c0_99 = arith.constant 0 : index
    %168 = vector.load %arg6[%c3_97, %c0_98, %c0_99] : memref<6x32x16xbf16, #tpu.memory_space<vmem>>, vector<1x32x16xbf16>
    %169 = vector.shape_cast %168 : vector<1x32x16xbf16> to vector<32x16xbf16>
    %170 = arith.truncf %167 : vector<16x16xf32> to vector<16x16xbf16>
    %cst_100 = arith.constant dense<0.000000e+00> : vector<32x16xf32>
    %171 = tpu.matmul %169, %170, %cst_100 {dimension_numbers = #tpu.dot_dimension_numbers<[1], [0], [0], [1], [0, 0, 1, 1], [], []>} : vector<32x16xbf16>, vector<16x16xbf16>, vector<32x16xf32> -> vector<32x16xf32>
    %c3_101 = arith.constant 3 : index
    %c0_102 = arith.constant 0 : index
    %c0_103 = arith.constant 0 : index
    %172 = vector.load %arg7[%c3_101, %c0_102, %c0_103] : memref<6x32x1xf32, #tpu.memory_space<vmem>>, vector<1x32x1xf32>
    %173 = vector.shape_cast %172 : vector<1x32x1xf32> to vector<32x1xf32>
    %174 = vector.broadcast %173 : vector<32x1xf32> to vector<32x16xf32>
    %175 = arith.addf %171, %174 : vector<32x16xf32>
    %176 = vector.extract_strided_slice %175 {offsets = [0, 0], sizes = [16, 16], strides = [1, 1]} : vector<32x16xf32> to vector<16x16xf32>
    %177 = arith.addf %136, %176 : vector<16x16xf32>
    %178 = vector.extract_strided_slice %175 {offsets = [16, 0], sizes = [16, 16], strides = [1, 1]} : vector<32x16xf32> to vector<16x16xf32>
    %179 = arith.addf %138, %178 : vector<16x16xf32>
    %c2_i32_104 = arith.constant 2 : i32
    %180 = tpu.dynamic_rotate %177 by %c2_i32_104 dim 1 : vector<16x16xf32>, i32 -> vector<16x16xf32>
    %cst_105 = arith.constant 0.000000e+00 : f32
    %181 = vector.shape_cast %12 : vector<1x16xi1> to vector<1x16xi1>
    %182 = vector.broadcast %181 : vector<1x16xi1> to vector<16x16xi1>
    %183 = vector.broadcast %cst_105 : f32 to vector<16x16xf32>
    %184 = arith.select %182, %180, %183 : vector<16x16xi1>, vector<16x16xf32>
    %185 = arith.truncf %184 : vector<16x16xf32> to vector<16x16xbf16>
    %c4 = arith.constant 4 : index
    %c0_106 = arith.constant 0 : index
    %c0_107 = arith.constant 0 : index
    %c0_108 = arith.constant 0 : index
    %186 = vector.load %arg4[%c4, %c0_106, %c0_107, %c0_108] : memref<6x2x32x16xbf16, #tpu.memory_space<vmem>>, vector<1x1x32x16xbf16>
    %187 = vector.shape_cast %186 : vector<1x1x32x16xbf16> to vector<32x16xbf16>
    %cst_109 = arith.constant dense<0.000000e+00> : vector<32x16xf32>
    %188 = tpu.matmul %187, %185, %cst_109 {dimension_numbers = #tpu.dot_dimension_numbers<[1], [0], [0], [1], [0, 0, 1, 1], [], []>} : vector<32x16xbf16>, vector<16x16xbf16>, vector<32x16xf32> -> vector<32x16xf32>
    %189 = arith.truncf %177 : vector<16x16xf32> to vector<16x16xbf16>
    %c4_110 = arith.constant 4 : index
    %c1_111 = arith.constant 1 : index
    %c0_112 = arith.constant 0 : index
    %c0_113 = arith.constant 0 : index
    %190 = vector.load %arg4[%c4_110, %c1_111, %c0_112, %c0_113] : memref<6x2x32x16xbf16, #tpu.memory_space<vmem>>, vector<1x1x32x16xbf16>
    %191 = vector.shape_cast %190 : vector<1x1x32x16xbf16> to vector<32x16xbf16>
    %cst_114 = arith.constant dense<0.000000e+00> : vector<32x16xf32>
    %192 = tpu.matmul %191, %189, %cst_114 {dimension_numbers = #tpu.dot_dimension_numbers<[1], [0], [0], [1], [0, 0, 1, 1], [], []>} : vector<32x16xbf16>, vector<16x16xbf16>, vector<32x16xf32> -> vector<32x16xf32>
    %193 = arith.addf %188, %192 : vector<32x16xf32>
    %c4_115 = arith.constant 4 : index
    %c0_116 = arith.constant 0 : index
    %c0_117 = arith.constant 0 : index
    %194 = vector.load %arg5[%c4_115, %c0_116, %c0_117] : memref<6x32x1xf32, #tpu.memory_space<vmem>>, vector<1x32x1xf32>
    %195 = vector.shape_cast %194 : vector<1x32x1xf32> to vector<32x1xf32>
    %196 = vector.broadcast %195 : vector<32x1xf32> to vector<32x16xf32>
    %197 = arith.addf %193, %196 : vector<32x16xf32>
    %198 = vector.extract_strided_slice %197 {offsets = [0, 0], sizes = [16, 16], strides = [1, 1]} : vector<32x16xf32> to vector<16x16xf32>
    %199 = vector.extract_strided_slice %197 {offsets = [16, 0], sizes = [16, 16], strides = [1, 1]} : vector<32x16xf32> to vector<16x16xf32>
    %200 = math.tanh %198 : vector<16x16xf32>
    %cst_118 = arith.constant 5.000000e-01 : f32
    %201 = vector.broadcast %cst_118 : f32 to vector<16x16xf32>
    %202 = arith.mulf %201, %199 : vector<16x16xf32>
    %203 = math.tanh %202 : vector<16x16xf32>
    %cst_119 = arith.constant 1.000000e+00 : f32
    %204 = vector.broadcast %cst_119 : f32 to vector<16x16xf32>
    %205 = arith.addf %203, %204 : vector<16x16xf32>
    %cst_120 = arith.constant 5.000000e-01 : f32
    %206 = vector.broadcast %cst_120 : f32 to vector<16x16xf32>
    %207 = arith.mulf %206, %205 : vector<16x16xf32>
    %208 = arith.mulf %200, %207 : vector<16x16xf32>
    %c4_121 = arith.constant 4 : index
    %c0_122 = arith.constant 0 : index
    %c0_123 = arith.constant 0 : index
    %209 = vector.load %arg6[%c4_121, %c0_122, %c0_123] : memref<6x32x16xbf16, #tpu.memory_space<vmem>>, vector<1x32x16xbf16>
    %210 = vector.shape_cast %209 : vector<1x32x16xbf16> to vector<32x16xbf16>
    %211 = arith.truncf %208 : vector<16x16xf32> to vector<16x16xbf16>
    %cst_124 = arith.constant dense<0.000000e+00> : vector<32x16xf32>
    %212 = tpu.matmul %210, %211, %cst_124 {dimension_numbers = #tpu.dot_dimension_numbers<[1], [0], [0], [1], [0, 0, 1, 1], [], []>} : vector<32x16xbf16>, vector<16x16xbf16>, vector<32x16xf32> -> vector<32x16xf32>
    %c4_125 = arith.constant 4 : index
    %c0_126 = arith.constant 0 : index
    %c0_127 = arith.constant 0 : index
    %213 = vector.load %arg7[%c4_125, %c0_126, %c0_127] : memref<6x32x1xf32, #tpu.memory_space<vmem>>, vector<1x32x1xf32>
    %214 = vector.shape_cast %213 : vector<1x32x1xf32> to vector<32x1xf32>
    %215 = vector.broadcast %214 : vector<32x1xf32> to vector<32x16xf32>
    %216 = arith.addf %212, %215 : vector<32x16xf32>
    %217 = vector.extract_strided_slice %216 {offsets = [0, 0], sizes = [16, 16], strides = [1, 1]} : vector<32x16xf32> to vector<16x16xf32>
    %218 = arith.addf %177, %217 : vector<16x16xf32>
    %219 = vector.extract_strided_slice %216 {offsets = [16, 0], sizes = [16, 16], strides = [1, 1]} : vector<32x16xf32> to vector<16x16xf32>
    %220 = arith.addf %179, %219 : vector<16x16xf32>
    %c4_i32_128 = arith.constant 4 : i32
    %221 = tpu.dynamic_rotate %218 by %c4_i32_128 dim 1 : vector<16x16xf32>, i32 -> vector<16x16xf32>
    %cst_129 = arith.constant 0.000000e+00 : f32
    %222 = vector.shape_cast %14 : vector<1x16xi1> to vector<1x16xi1>
    %223 = vector.broadcast %222 : vector<1x16xi1> to vector<16x16xi1>
    %224 = vector.broadcast %cst_129 : f32 to vector<16x16xf32>
    %225 = arith.select %223, %221, %224 : vector<16x16xi1>, vector<16x16xf32>
    %226 = arith.truncf %225 : vector<16x16xf32> to vector<16x16xbf16>
    %c5 = arith.constant 5 : index
    %c0_130 = arith.constant 0 : index
    %c0_131 = arith.constant 0 : index
    %c0_132 = arith.constant 0 : index
    %227 = vector.load %arg4[%c5, %c0_130, %c0_131, %c0_132] : memref<6x2x32x16xbf16, #tpu.memory_space<vmem>>, vector<1x1x32x16xbf16>
    %228 = vector.shape_cast %227 : vector<1x1x32x16xbf16> to vector<32x16xbf16>
    %cst_133 = arith.constant dense<0.000000e+00> : vector<32x16xf32>
    %229 = tpu.matmul %228, %226, %cst_133 {dimension_numbers = #tpu.dot_dimension_numbers<[1], [0], [0], [1], [0, 0, 1, 1], [], []>} : vector<32x16xbf16>, vector<16x16xbf16>, vector<32x16xf32> -> vector<32x16xf32>
    %230 = arith.truncf %218 : vector<16x16xf32> to vector<16x16xbf16>
    %c5_134 = arith.constant 5 : index
    %c1_135 = arith.constant 1 : index
    %c0_136 = arith.constant 0 : index
    %c0_137 = arith.constant 0 : index
    %231 = vector.load %arg4[%c5_134, %c1_135, %c0_136, %c0_137] : memref<6x2x32x16xbf16, #tpu.memory_space<vmem>>, vector<1x1x32x16xbf16>
    %232 = vector.shape_cast %231 : vector<1x1x32x16xbf16> to vector<32x16xbf16>
    %cst_138 = arith.constant dense<0.000000e+00> : vector<32x16xf32>
    %233 = tpu.matmul %232, %230, %cst_138 {dimension_numbers = #tpu.dot_dimension_numbers<[1], [0], [0], [1], [0, 0, 1, 1], [], []>} : vector<32x16xbf16>, vector<16x16xbf16>, vector<32x16xf32> -> vector<32x16xf32>
    %234 = arith.addf %229, %233 : vector<32x16xf32>
    %c5_139 = arith.constant 5 : index
    %c0_140 = arith.constant 0 : index
    %c0_141 = arith.constant 0 : index
    %235 = vector.load %arg5[%c5_139, %c0_140, %c0_141] : memref<6x32x1xf32, #tpu.memory_space<vmem>>, vector<1x32x1xf32>
    %236 = vector.shape_cast %235 : vector<1x32x1xf32> to vector<32x1xf32>
    %237 = vector.broadcast %236 : vector<32x1xf32> to vector<32x16xf32>
    %238 = arith.addf %234, %237 : vector<32x16xf32>
    %239 = vector.extract_strided_slice %238 {offsets = [0, 0], sizes = [16, 16], strides = [1, 1]} : vector<32x16xf32> to vector<16x16xf32>
    %240 = vector.extract_strided_slice %238 {offsets = [16, 0], sizes = [16, 16], strides = [1, 1]} : vector<32x16xf32> to vector<16x16xf32>
    %241 = math.tanh %239 : vector<16x16xf32>
    %cst_142 = arith.constant 5.000000e-01 : f32
    %242 = vector.broadcast %cst_142 : f32 to vector<16x16xf32>
    %243 = arith.mulf %242, %240 : vector<16x16xf32>
    %244 = math.tanh %243 : vector<16x16xf32>
    %cst_143 = arith.constant 1.000000e+00 : f32
    %245 = vector.broadcast %cst_143 : f32 to vector<16x16xf32>
    %246 = arith.addf %244, %245 : vector<16x16xf32>
    %cst_144 = arith.constant 5.000000e-01 : f32
    %247 = vector.broadcast %cst_144 : f32 to vector<16x16xf32>
    %248 = arith.mulf %247, %246 : vector<16x16xf32>
    %249 = arith.mulf %241, %248 : vector<16x16xf32>
    %c5_145 = arith.constant 5 : index
    %c0_146 = arith.constant 0 : index
    %c0_147 = arith.constant 0 : index
    %250 = vector.load %arg6[%c5_145, %c0_146, %c0_147] : memref<6x32x16xbf16, #tpu.memory_space<vmem>>, vector<1x32x16xbf16>
    %251 = vector.shape_cast %250 : vector<1x32x16xbf16> to vector<32x16xbf16>
    %252 = arith.truncf %249 : vector<16x16xf32> to vector<16x16xbf16>
    %cst_148 = arith.constant dense<0.000000e+00> : vector<32x16xf32>
    %253 = tpu.matmul %251, %252, %cst_148 {dimension_numbers = #tpu.dot_dimension_numbers<[1], [0], [0], [1], [0, 0, 1, 1], [], []>} : vector<32x16xbf16>, vector<16x16xbf16>, vector<32x16xf32> -> vector<32x16xf32>
    %c5_149 = arith.constant 5 : index
    %c0_150 = arith.constant 0 : index
    %c0_151 = arith.constant 0 : index
    %254 = vector.load %arg7[%c5_149, %c0_150, %c0_151] : memref<6x32x1xf32, #tpu.memory_space<vmem>>, vector<1x32x1xf32>
    %255 = vector.shape_cast %254 : vector<1x32x1xf32> to vector<32x1xf32>
    %256 = vector.broadcast %255 : vector<32x1xf32> to vector<32x16xf32>
    %257 = arith.addf %253, %256 : vector<32x16xf32>
    %258 = vector.extract_strided_slice %257 {offsets = [16, 0], sizes = [16, 16], strides = [1, 1]} : vector<32x16xf32> to vector<16x16xf32>
    %259 = arith.addf %220, %258 : vector<16x16xf32>
    %cst_152 = arith.constant 0.000000e+00 : f32
    %260 = vector.broadcast %cst_152 : f32 to vector<16x16xf32>
    %261 = arith.maximumf %259, %260 : vector<16x16xf32>
    %c0_153 = arith.constant 0 : index
    %c0_154 = arith.constant 0 : index
    %262 = vector.load %arg8[%c0_153, %c0_154] : memref<16x16xbf16, #tpu.memory_space<vmem>>, vector<16x16xbf16>
    %263 = arith.truncf %261 : vector<16x16xf32> to vector<16x16xbf16>
    %cst_155 = arith.constant dense<0.000000e+00> : vector<16x16xf32>
    %264 = tpu.matmul %262, %263, %cst_155 {dimension_numbers = #tpu.dot_dimension_numbers<[1], [0], [0], [1], [0, 0, 1, 1], [], []>} : vector<16x16xbf16>, vector<16x16xbf16>, vector<16x16xf32> -> vector<16x16xf32>
    %c0_156 = arith.constant 0 : index
    %c0_157 = arith.constant 0 : index
    %265 = vector.load %arg9[%c0_156, %c0_157] : memref<16x1xf32, #tpu.memory_space<vmem>>, vector<16x1xf32>
    %266 = vector.broadcast %265 : vector<16x1xf32> to vector<16x16xf32>
    %267 = arith.addf %264, %266 : vector<16x16xf32>
    %cst_158 = arith.constant 0.000000e+00 : f32
    %268 = vector.broadcast %cst_158 : f32 to vector<16x16xf32>
    %269 = arith.maximumf %267, %268 : vector<16x16xf32>
    %c0_159 = arith.constant 0 : index
    %c0_160 = arith.constant 0 : index
    %270 = vector.load %arg10[%c0_159, %c0_160] : memref<4x16xbf16, #tpu.memory_space<vmem>>, vector<4x16xbf16>
    %271 = arith.truncf %269 : vector<16x16xf32> to vector<16x16xbf16>
    %cst_161 = arith.constant dense<0.000000e+00> : vector<4x16xf32>
    %272 = tpu.matmul %270, %271, %cst_161 {dimension_numbers = #tpu.dot_dimension_numbers<[1], [0], [0], [1], [0, 0, 1, 1], [], []>} : vector<4x16xbf16>, vector<16x16xbf16>, vector<4x16xf32> -> vector<4x16xf32>
    %c0_162 = arith.constant 0 : index
    %c0_163 = arith.constant 0 : index
    %273 = vector.load %arg11[%c0_162, %c0_163] : memref<4x1xf32, #tpu.memory_space<vmem>>, vector<4x1xf32>
    %274 = vector.broadcast %273 : vector<4x1xf32> to vector<4x16xf32>
    %275 = arith.addf %272, %274 : vector<4x16xf32>
    %c0_164 = arith.constant 0 : index
    %c0_165 = arith.constant 0 : index
    %c0_166 = arith.constant 0 : index
    %276 = vector.load %arg12[%c0_164, %c0_165, %c0_166] : memref<1x4x16xf32, #tpu.memory_space<vmem>>, vector<1x4x16xf32>
    %277 = vector.shape_cast %276 : vector<1x4x16xf32> to vector<4x16xf32>
    %278 = vector.shape_cast %275 : vector<4x16xf32> to vector<1x4x16xf32>
    tpu.vector_store %arg12[%c0_164, %c0_165, %c0_166], %278 {strides = array<i32>} : memref<1x4x16xf32, #tpu.memory_space<vmem>>, vector<1x4x16xf32>,
    return
  }
  func.func @transform_0(%arg0: i32) -> (i32, i32, i32) {
    %c0_i32 = arith.constant 0 : i32
    %c0_i32_0 = arith.constant 0 : i32
    %c0_i32_1 = arith.constant 0 : i32
    return %arg0, %c0_i32, %c0_i32_0 : i32, i32, i32
  }
  func.func @transform_1(%arg0: i32) -> (i32, i32) {
    %c0_i32 = arith.constant 0 : i32
    %c0_i32_0 = arith.constant 0 : i32
    %c0_i32_1 = arith.constant 0 : i32
    return %c0_i32, %c0_i32_0 : i32, i32
  }
  func.func @transform_2(%arg0: i32) -> (i32, i32) {
    %c0_i32 = arith.constant 0 : i32
    %c0_i32_0 = arith.constant 0 : i32
    %c0_i32_1 = arith.constant 0 : i32
    return %c0_i32, %c0_i32_0 : i32, i32
  }
  func.func @transform_3(%arg0: i32) -> (i32, i32, i32, i32) {
    %c0_i32 = arith.constant 0 : i32
    %c0_i32_0 = arith.constant 0 : i32
    %c0_i32_1 = arith.constant 0 : i32
    %c0_i32_2 = arith.constant 0 : i32
    %c0_i32_3 = arith.constant 0 : i32
    return %c0_i32, %c0_i32_0, %c0_i32_1, %c0_i32_2 : i32, i32, i32, i32
  }
  func.func @transform_4(%arg0: i32) -> (i32, i32, i32) {
    %c0_i32 = arith.constant 0 : i32
    %c0_i32_0 = arith.constant 0 : i32
    %c0_i32_1 = arith.constant 0 : i32
    %c0_i32_2 = arith.constant 0 : i32
    return %c0_i32, %c0_i32_0, %c0_i32_1 : i32, i32, i32
  }
  func.func @transform_5(%arg0: i32) -> (i32, i32, i32) {
    %c0_i32 = arith.constant 0 : i32
    %c0_i32_0 = arith.constant 0 : i32
    %c0_i32_1 = arith.constant 0 : i32
    %c0_i32_2 = arith.constant 0 : i32
    return %c0_i32, %c0_i32_0, %c0_i32_1 : i32, i32, i32
  }
  func.func @transform_6(%arg0: i32) -> (i32, i32, i32) {
    %c0_i32 = arith.constant 0 : i32
    %c0_i32_0 = arith.constant 0 : i32
    %c0_i32_1 = arith.constant 0 : i32
    %c0_i32_2 = arith.constant 0 : i32
    return %c0_i32, %c0_i32_0, %c0_i32_1 : i32, i32, i32
  }
  func.func @transform_7(%arg0: i32) -> (i32, i32) {
    %c0_i32 = arith.constant 0 : i32
    %c0_i32_0 = arith.constant 0 : i32
    %c0_i32_1 = arith.constant 0 : i32
    return %c0_i32, %c0_i32_0 : i32, i32
  }
  func.func @transform_8(%arg0: i32) -> (i32, i32) {
    %c0_i32 = arith.constant 0 : i32
    %c0_i32_0 = arith.constant 0 : i32
    %c0_i32_1 = arith.constant 0 : i32
    return %c0_i32, %c0_i32_0 : i32, i32
  }
  func.func @transform_9(%arg0: i32) -> (i32, i32) {
    %c0_i32 = arith.constant 0 : i32
    %c0_i32_0 = arith.constant 0 : i32
    %c0_i32_1 = arith.constant 0 : i32
    return %c0_i32, %c0_i32_0 : i32, i32
  }
  func.func @transform_10(%arg0: i32) -> (i32, i32) {
    %c0_i32 = arith.constant 0 : i32
    %c0_i32_0 = arith.constant 0 : i32
    %c0_i32_1 = arith.constant 0 : i32
    return %c0_i32, %c0_i32_0 : i32, i32
  }
  func.func @transform_11(%arg0: i32) -> (i32, i32, i32) {
    %c0_i32 = arith.constant 0 : i32
    %c0_i32_0 = arith.constant 0 : i32
    %c0_i32_1 = arith.constant 0 : i32
    return %arg0, %c0_i32, %c0_i32_0 : i32, i32, i32
  }
}

</mosaic_0001>

<llo_original>
// kernel: tpu_custom_call.1
$region0: #{tpu_custom_call.1}
  #allocation0 [shape = 'u32[]', space=smem, size = 0x4, offset = 0x4, fixed_abs, tag = 'smem constant byte address 0x4 - core index']
  #allocation1 [shape = 'u32[144,128]{1,0:T(1,128)}', space=vmem, size = 0x12000, scoped, tag = 'internal scratch']
  %s0 = inlined_call_operand.vmem [shape: f32[2,4,16], index: 0, kind: input, shape index: {}]
  %s1 = inlined_call_operand.vmem [shape: bf16[16,4], index: 1, kind: input, shape index: {}]
  %s2 = inlined_call_operand.vmem [shape: f32[16,1], index: 2, kind: input, shape index: {}]
  %s3 = inlined_call_operand.vmem [shape: bf16[6,2,32,16], index: 3, kind: input, shape index: {}]
  %s4 = inlined_call_operand.vmem [shape: f32[6,32,1], index: 4, kind: input, shape index: {}]
  %s5 = inlined_call_operand.vmem [shape: bf16[6,32,16], index: 5, kind: input, shape index: {}]
  %s6 = inlined_call_operand.vmem [shape: f32[6,32,1], index: 6, kind: input, shape index: {}]
  %s7 = inlined_call_operand.vmem [shape: bf16[16,16], index: 7, kind: input, shape index: {}]
  %s8 = inlined_call_operand.vmem [shape: f32[16,1], index: 8, kind: input, shape index: {}]
  %s9 = inlined_call_operand.vmem [shape: bf16[4,16], index: 9, kind: input, shape index: {}]
  %s10 = inlined_call_operand.vmem [shape: f32[4,1], index: 10, kind: input, shape index: {}]
  %s11 = inlined_call_operand.hbm [shape: f32[2,4,16], index: 11, kind: output, shape index: {}]
  %s12 = sld [smem:[#allocation0]]
  $region77: #{tpu_custom_call.1} parent=0
    _
  %s14 = ssub.s32 1, %s12
  %s15 = scalar_select 0, %s14, %s12
  $region1: #{tpu_custom_call.1} parent=0
    #allocation2 [shape = 'u8[4096]{0}', space=vmem, size = 0x1000, scoped, tag = 'output window, operand 0']
    #allocation3 [shape = 's32[2]{0}', space=sflag, size = 0x8, scoped, tag = 'scoped memory for tpu_custom_call.1']
    %16 = vsyncpa [#allocation3], 0
    %s17 = scalar_lea.sflag [#allocation3], 1
    %18 = vsyncpa %s17, 0
    loop: start=0, step=1, limit=4
    $region2: #{tpu_custom_call.1} parent=1 // loop_pre_header
      _
    $region3: #{tpu_custom_call.1} parent=1 // loop_header
      %s20 = sphi 0, %s24
      %p21 = scmp.ge.s32.totalorder %s20, 4
      %s30 = sphi 0, %s32
      %s33 = sphi 0, %s30
      %s34 = sphi 0, %s33
      %s50 = sphi 0, %s34
      %s54 = sphi 0, %s54
      %s56 = sphi 0, %s54
      %s57 = sphi 0, %s56
      %s71 = sphi 0, %s57
      %s75 = sphi 0, %s75
      %s77 = sphi 0, %s75
      %s78 = sphi 0, %s77
      %s92 = sphi 0, %s78
      %s96 = sphi 0, %s96
      %s98 = sphi 0, %s96
      %s99 = sphi 0, %s98
      %s113 = sphi 0, %s99
      %s117 = sphi 0, %s117
      %s119 = sphi 0, %s117
      %s120 = sphi 0, %s119
      %s134 = sphi 0, %s120
      %s138 = sphi 0, %s138
      %s140 = sphi 0, %s138
      %s141 = sphi 0, %s140
      %s155 = sphi 0, %s141
      %s159 = sphi 0, %s159
      %s161 = sphi 0, %s159
      %s162 = sphi 0, %s161
      %s176 = sphi 0, %s162
      %s180 = sphi 0, %s180
      %s182 = sphi 0, %s180
      %s183 = sphi 0, %s182
      %s197 = sphi 0, %s183
      %s201 = sphi 0, %s201
      %s203 = sphi 0, %s201
      %s204 = sphi 0, %s203
      %s218 = sphi 0, %s204
      %s222 = sphi 0, %s222
      %s224 = sphi 0, %s222
      %s225 = sphi 0, %s224
      %s239 = sphi 0, %s225
      %s243 = sphi 0, %s243
      %s245 = sphi 0, %s243
      %s246 = sphi 0, %s245
      %s260 = sphi 0, %s246
      %s266 = sphi 0, %s268
      %s269 = sphi 0, %s266
      %s270 = sphi 0, %s269
      %s286 = sphi 0, %s270
    $region4: #{tpu_custom_call.1} parent=1 // loop_header_branch
      %23 = sbr.rel (%p21) target = $region8
    $region5: #{tpu_custom_call.1} parent=1 // loop_body
      %s25 = ssub.s32 %s20, 1
      %s26 = ssub.s32 %s20, 2
      %s27 = sadd.s32 %s20, 1
      %s28 = ssub.s32 %s20, %s27
      %p29 = scmp.eq.s32.totalorder %s28, 0
      %s31 = sadd.s32 %s30, 1
      %s32 = scalar_select %p29, %s30, %s31
      %p35 = pneg %p29
      %p36 = scmp.eq.s32.totalorder %s20, 1
      %p37 = por %p35, %p36
      %p38 = scmp.ne.s32.totalorder %s30, %s33
      %p39 = scmp.eq.s32.totalorder %s20, 0
      %p40 = por %p38, %p39
      %p41 = scmp.ne.s32.totalorder %s30, %s33
      %p42 = scmp.eq.s32.totalorder %s25, 1
      %p43 = por %p41, %p42
      %p44 = scmp.ne.s32.totalorder %s33, %s34
      %p45 = scmp.eq.s32.totalorder %s25, 0
      %p46 = por %p44, %p45
      %p47 = scmp.ne.s32.totalorder %s33, %s34
      %p48 = scmp.eq.s32.totalorder %s26, 1
      %p49 = por %p47, %p48
      %p51 = scmp.ne.s32.totalorder %s34, %s50
      %p52 = scmp.eq.s32.totalorder %s26, 0
      %p53 = por %p51, %p52
      %s55 = sadd.s32 %s54, 1
      %p58 = scmp.eq.s32.totalorder %s20, 1
      %p59 = scmp.ne.s32.totalorder %s54, %s56
      %p60 = scmp.eq.s32.totalorder %s20, 0
      %p61 = por %p59, %p60
      %p62 = scmp.ne.s32.totalorder %s54, %s56
      %p63 = scmp.eq.s32.totalorder %s25, 1
      %p64 = por %p62, %p63
      %p65 = scmp.ne.s32.totalorder %s56, %s57
      %p66 = scmp.eq.s32.totalorder %s25, 0
      %p67 = por %p65, %p66
      %p68 = scmp.ne.s32.totalorder %s56, %s57
      %p69 = scmp.eq.s32.totalorder %s26, 1
      %p70 = por %p68, %p69
      %p72 = scmp.ne.s32.totalorder %s57, %s71
      %p73 = scmp.eq.s32.totalorder %s26, 0
      %p74 = por %p72, %p73
      %s76 = sadd.s32 %s75, 1
      %p79 = scmp.eq.s32.totalorder %s20, 1
      %p80 = scmp.ne.s32.totalorder %s75, %s77
      %p81 = scmp.eq.s32.totalorder %s20, 0
      %p82 = por %p80, %p81
      %p83 = scmp.ne.s32.totalorder %s75, %s77
      %p84 = scmp.eq.s32.totalorder %s25, 1
      %p85 = por %p83, %p84
      %p86 = scmp.ne.s32.totalorder %s77, %s78
      %p87 = scmp.eq.s32.totalorder %s25, 0
      %p88 = por %p86, %p87
      %p89 = scmp.ne.s32.totalorder %s77, %s78
      %p90 = scmp.eq.s32.totalorder %s26, 1
      %p91 = por %p89, %p90
      %p93 = scmp.ne.s32.totalorder %s78, %s92
      %p94 = scmp.eq.s32.totalorder %s26, 0
      %p95 = por %p93, %p94
      %s97 = sadd.s32 %s96, 1
      %p100 = scmp.eq.s32.totalorder %s20, 1
      %p101 = scmp.ne.s32.totalorder %s96, %s98
      %p102 = scmp.eq.s32.totalorder %s20, 0
      %p103 = por %p101, %p102
      %p104 = scmp.ne.s32.totalorder %s96, %s98
      %p105 = scmp.eq.s32.totalorder %s25, 1
      %p106 = por %p104, %p105
      %p107 = scmp.ne.s32.totalorder %s98, %s99
      %p108 = scmp.eq.s32.totalorder %s25, 0
      %p109 = por %p107, %p108
      %p110 = scmp.ne.s32.totalorder %s98, %s99
      %p111 = scmp.eq.s32.totalorder %s26, 1
      %p112 = por %p110, %p111
      %p114 = scmp.ne.s32.totalorder %s99, %s113
      %p115 = scmp.eq.s32.totalorder %s26, 0
      %p116 = por %p114, %p115
      %s118 = sadd.s32 %s117, 1
      %p121 = scmp.eq.s32.totalorder %s20, 1
      %p122 = scmp.ne.s32.totalorder %s117, %s119
      %p123 = scmp.eq.s32.totalorder %s20, 0
      %p124 = por %p122, %p123
      %p125 = scmp.ne.s32.totalorder %s117, %s119
      %p126 = scmp.eq.s32.totalorder %s25, 1
      %p127 = por %p125, %p126
      %p128 = scmp.ne.s32.totalorder %s119, %s120
      %p129 = scmp.eq.s32.totalorder %s25, 0
      %p130 = por %p128, %p129
      %p131 = scmp.ne.s32.totalorder %s119, %s120
      %p132 = scmp.eq.s32.totalorder %s26, 1
      %p133 = por %p131, %p132
      %p135 = scmp.ne.s32.totalorder %s120, %s134
      %p136 = scmp.eq.s32.totalorder %s26, 0
      %p137 = por %p135, %p136
      %s139 = sadd.s32 %s138, 1
      %p142 = scmp.eq.s32.totalorder %s20, 1
      %p143 = scmp.ne.s32.totalorder %s138, %s140
      %p144 = scmp.eq.s32.totalorder %s20, 0
      %p145 = por %p143, %p144
      %p146 = scmp.ne.s32.totalorder %s138, %s140
      %p147 = scmp.eq.s32.totalorder %s25, 1
      %p148 = por %p146, %p147
      %p149 = scmp.ne.s32.totalorder %s140, %s141
      %p150 = scmp.eq.s32.totalorder %s25, 0
      %p151 = por %p149, %p150
      %p152 = scmp.ne.s32.totalorder %s140, %s141
      %p153 = scmp.eq.s32.totalorder %s26, 1
      %p154 = por %p152, %p153
      %p156 = scmp.ne.s32.totalorder %s141, %s155
      %p157 = scmp.eq.s32.totalorder %s26, 0
      %p158 = por %p156, %p157
      %s160 = sadd.s32 %s159, 1
      %p163 = scmp.eq.s32.totalorder %s20, 1
      %p164 = scmp.ne.s32.totalorder %s159, %s161
      %p165 = scmp.eq.s32.totalorder %s20, 0
      %p166 = por %p164, %p165
      %p167 = scmp.ne.s32.totalorder %s159, %s161
      %p168 = scmp.eq.s32.totalorder %s25, 1
      %p169 = por %p167, %p168
      %p170 = scmp.ne.s32.totalorder %s161, %s162
      %p171 = scmp.eq.s32.totalorder %s25, 0
      %p172 = por %p170, %p171
      %p173 = scmp.ne.s32.totalorder %s161, %s162
      %p174 = scmp.eq.s32.totalorder %s26, 1
      %p175 = por %p173, %p174
      %p177 = scmp.ne.s32.totalorder %s162, %s176
      %p178 = scmp.eq.s32.totalorder %s26, 0
      %p179 = por %p177, %p178
      %s181 = sadd.s32 %s180, 1
      %p184 = scmp.eq.s32.totalorder %s20, 1
      %p185 = scmp.ne.s32.totalorder %s180, %s182
      %p186 = scmp.eq.s32.totalorder %s20, 0
      %p187 = por %p185, %p186
      %p188 = scmp.ne.s32.totalorder %s180, %s182
      %p189 = scmp.eq.s32.totalorder %s25, 1
      %p190 = por %p188, %p189
      %p191 = scmp.ne.s32.totalorder %s182, %s183
      %p192 = scmp.eq.s32.totalorder %s25, 0
      %p193 = por %p191, %p192
      %p194 = scmp.ne.s32.totalorder %s182, %s183
      %p195 = scmp.eq.s32.totalorder %s26, 1
      %p196 = por %p194, %p195
      %p198 = scmp.ne.s32.totalorder %s183, %s197
      %p199 = scmp.eq.s32.totalorder %s26, 0
      %p200 = por %p198, %p199
      %s202 = sadd.s32 %s201, 1
      %p205 = scmp.eq.s32.totalorder %s20, 1
      %p206 = scmp.ne.s32.totalorder %s201, %s203
      %p207 = scmp.eq.s32.totalorder %s20, 0
      %p208 = por %p206, %p207
      %p209 = scmp.ne.s32.totalorder %s201, %s203
      %p210 = scmp.eq.s32.totalorder %s25, 1
      %p211 = por %p209, %p210
      %p212 = scmp.ne.s32.totalorder %s203, %s204
      %p213 = scmp.eq.s32.totalorder %s25, 0
      %p214 = por %p212, %p213
      %p215 = scmp.ne.s32.totalorder %s203, %s204
      %p216 = scmp.eq.s32.totalorder %s26, 1
      %p217 = por %p215, %p216
      %p219 = scmp.ne.s32.totalorder %s204, %s218
      %p220 = scmp.eq.s32.totalorder %s26, 0
      %p221 = por %p219, %p220
      %s223 = sadd.s32 %s222, 1
      %p226 = scmp.eq.s32.totalorder %s20, 1
      %p227 = scmp.ne.s32.totalorder %s222, %s224
      %p228 = scmp.eq.s32.totalorder %s20, 0
      %p229 = por %p227, %p228
      %p230 = scmp.ne.s32.totalorder %s222, %s224
      %p231 = scmp.eq.s32.totalorder %s25, 1
      %p232 = por %p230, %p231
      %p233 = scmp.ne.s32.totalorder %s224, %s225
      %p234 = scmp.eq.s32.totalorder %s25, 0
      %p235 = por %p233, %p234
      %p236 = scmp.ne.s32.totalorder %s224, %s225
      %p237 = scmp.eq.s32.totalorder %s26, 1
      %p238 = por %p236, %p237
      %p240 = scmp.ne.s32.totalorder %s225, %s239
      %p241 = scmp.eq.s32.totalorder %s26, 0
      %p242 = por %p240, %p241
      %s244 = sadd.s32 %s243, 1
      %p247 = scmp.eq.s32.totalorder %s20, 1
      %p248 = scmp.ne.s32.totalorder %s243, %s245
      %p249 = scmp.eq.s32.totalorder %s20, 0
      %p250 = por %p248, %p249
      %p251 = scmp.ne.s32.totalorder %s243, %s245
      %p252 = scmp.eq.s32.totalorder %s25, 1
      %p253 = por %p251, %p252
      %p254 = scmp.ne.s32.totalorder %s245, %s246
      %p255 = scmp.eq.s32.totalorder %s25, 0
      %p256 = por %p254, %p255
      %p257 = scmp.ne.s32.totalorder %s245, %s246
      %p258 = scmp.eq.s32.totalorder %s26, 1
      %p259 = por %p257, %p258
      %p261 = scmp.ne.s32.totalorder %s246, %s260
      %p262 = scmp.eq.s32.totalorder %s26, 0
      %p263 = por %p261, %p262
      %s264 = ssub.s32 %s20, %s27
      %p265 = scmp.eq.s32.totalorder %s264, 0
      %s267 = sadd.s32 %s266, 1
      %s268 = scalar_select %p265, %s266, %s267
      %p271 = pneg %p265
      %p272 = scmp.eq.s32.totalorder %s20, 1
      %p273 = por %p271, %p272
      %p274 = scmp.ne.s32.totalorder %s266, %s269
      %p275 = scmp.eq.s32.totalorder %s20, 0
      %p276 = por %p274, %p275
      %p277 = scmp.ne.s32.totalorder %s266, %s269
      %p278 = scmp.eq.s32.totalorder %s25, 1
      %p279 = por %p277, %p278
      %p280 = scmp.ne.s32.totalorder %s269, %s270
      %p281 = scmp.eq.s32.totalorder %s25, 0
      %p282 = por %p280, %p281
      %p283 = scmp.ne.s32.totalorder %s269, %s270
      %p284 = scmp.eq.s32.totalorder %s26, 1
      %p285 = por %p283, %p284
      %p287 = scmp.ne.s32.totalorder %s270, %s286
      %p288 = scmp.eq.s32.totalorder %s26, 0
      %p289 = por %p287, %p288
      %p290 = scmp.le.s32.totalorder 1, %s20
      %p291 = scmp.lt.s32.totalorder %s20, 3
      %p292 = pnand %p290, %p291
      %p293 = pneg %p292
      // Predicated region
      $region9: #{tpu_custom_call.1} parent=5 // pred_check
        _
      $region10: #{tpu_custom_call.1} parent=5 // pred_check_branch
        %295 = sbr.rel (%p292) target = $region12
      $region11: #{tpu_custom_call.1} parent=5 // pred_region
        %s296 = ssub.s32 %s20, 1
        // Predicated region
        $region13: #{tpu_custom_call.1} parent=11 // pred_check
          %p297 = pneg %p67
        $region14: #{tpu_custom_call.1} parent=11 // pred_check_branch
          %299 = sbr.rel (%p297) target = $region16
        $region15: #{tpu_custom_call.1} parent=11 // pred_region
          _
        $region16: #{tpu_custom_call.1} parent=11 // pred_fallthru
          _
        // Predicated region
        $region17: #{tpu_custom_call.1} parent=11 // pred_check
          %p300 = pneg %p88
        $region18: #{tpu_custom_call.1} parent=11 // pred_check_branch
          %302 = sbr.rel (%p300) target = $region20
        $region19: #{tpu_custom_call.1} parent=11 // pred_region
          _
        $region20: #{tpu_custom_call.1} parent=11 // pred_fallthru
          _
        // Predicated region
        $region21: #{tpu_custom_call.1} parent=11 // pred_check
          %p303 = pneg %p109
        $region22: #{tpu_custom_call.1} parent=11 // pred_check_branch
          %305 = sbr.rel (%p303) target = $region24
        $region23: #{tpu_custom_call.1} parent=11 // pred_region
          _
        $region24: #{tpu_custom_call.1} parent=11 // pred_fallthru
          _
        // Predicated region
        $region25: #{tpu_custom_call.1} parent=11 // pred_check
          %p306 = pneg %p130
        $region26: #{tpu_custom_call.1} parent=11 // pred_check_branch
          %308 = sbr.rel (%p306) target = $region28
        $region27: #{tpu_custom_call.1} parent=11 // pred_region
          _
        $region28: #{tpu_custom_call.1} parent=11 // pred_fallthru
          _
        // Predicated region
        $region29: #{tpu_custom_call.1} parent=11 // pred_check
          %p309 = pneg %p151
        $region30: #{tpu_custom_call.1} parent=11 // pred_check_branch
          %311 = sbr.rel (%p309) target = $region32
        $region31: #{tpu_custom_call.1} parent=11 // pred_region
          _
        $region32: #{tpu_custom_call.1} parent=11 // pred_fallthru
          _
        // Predicated region
        $region33: #{tpu_custom_call.1} parent=11 // pred_check
          %p312 = pneg %p172
        $region34: #{tpu_custom_call.1} parent=11 // pred_check_branch
          %314 = sbr.rel (%p312) target = $region36
        $region35: #{tpu_custom_call.1} parent=11 // pred_region
          _
        $region36: #{tpu_custom_call.1} parent=11 // pred_fallthru
          _
        // Predicated region
        $region37: #{tpu_custom_call.1} parent=11 // pred_check
          %p315 = pneg %p193
        $region38: #{tpu_custom_call.1} parent=11 // pred_check_branch
          %317 = sbr.rel (%p315) target = $region40
        $region39: #{tpu_custom_call.1} parent=11 // pred_region
          _
        $region40: #{tpu_custom_call.1} parent=11 // pred_fallthru
          _
        // Predicated region
        $region41: #{tpu_custom_call.1} parent=11 // pred_check
          %p318 = pneg %p214
        $region42: #{tpu_custom_call.1} parent=11 // pred_check_branch
          %320 = sbr.rel (%p318) target = $region44
        $region43: #{tpu_custom_call.1} parent=11 // pred_region
          _
        $region44: #{tpu_custom_call.1} parent=11 // pred_fallthru
          _
        // Predicated region
        $region45: #{tpu_custom_call.1} parent=11 // pred_check
          %p321 = pneg %p235
        $region46: #{tpu_custom_call.1} parent=11 // pred_check_branch
          %323 = sbr.rel (%p321) target = $region48
        $region47: #{tpu_custom_call.1} parent=11 // pred_region
          _
        $region48: #{tpu_custom_call.1} parent=11 // pred_fallthru
          _
        // Predicated region
        $region49: #{tpu_custom_call.1} parent=11 // pred_check
          %p324 = pneg %p256
        $region50: #{tpu_custom_call.1} parent=11 // pred_check_branch
          %326 = sbr.rel (%p324) target = $region52
        $region51: #{tpu_custom_call.1} parent=11 // pred_region
          _
        $region52: #{tpu_custom_call.1} parent=11 // pred_fallthru
          _
      $region12: #{tpu_custom_call.1} parent=5 // pred_fallthru
        _
      %p327 = scmp.lt.s32.totalorder %s20, 2
      // Predicated region
      $region53: #{tpu_custom_call.1} parent=5 // pred_check
        %p328 = pneg %p327
      $region54: #{tpu_custom_call.1} parent=5 // pred_check_branch
        %330 = sbr.rel (%p328) target = $region56
      $region55: #{tpu_custom_call.1} parent=5 // pred_region
        // Predicated region
        $region57: #{tpu_custom_call.1} parent=55 // pred_check
          %p331 = pneg %p40
        $region58: #{tpu_custom_call.1} parent=55 // pred_check_branch
          %333 = sbr.rel (%p331) target = $region60
        $region59: #{tpu_custom_call.1} parent=55 // pred_region
          %p334 = scmp.lt.s32.totalorder %s20, 1
          %s335 = scalar_select %p334, %s20, 1
          %s336 = smul.addr %s335, 4
          %s337 = scalar_lea.vmem %s0, %s336
        $region60: #{tpu_custom_call.1} parent=55 // pred_fallthru
          _
      $region56: #{tpu_custom_call.1} parent=5 // pred_fallthru
        _
      %p338 = scmp.le.s32.totalorder 1, %s20
      %p339 = scmp.lt.s32.totalorder %s20, 3
      %p340 = pnand %p338, %p339
      %p341 = pneg %p340
      // Predicated region
      $region61: #{tpu_custom_call.1} parent=5 // pred_check
        _
      $region62: #{tpu_custom_call.1} parent=5 // pred_check_branch
        %343 = sbr.rel (%p340) target = $region64
      $region63: #{tpu_custom_call.1} parent=5 // pred_region
        %s344 = ssub.s32 %s20, 1
        %p345 = scmp.lt.s32.totalorder %s25, 1
        %s346 = scalar_select %p345, %s25, 1
        %s347 = smul.addr %s346, 4
        %s348 = scalar_lea.vmem %s0, %s347
        %p349 = pneg %p46
        %p350 = pneg %p43
        %p351 = pneg %p67
        %p352 = pneg %p64
        %p353 = pneg %p88
        %p354 = pneg %p85
        %p355 = pneg %p109
        %p356 = pneg %p106
        %p357 = pneg %p130
        %p358 = pneg %p127
        %p359 = pneg %p151
        %p360 = pneg %p148
        %p361 = pneg %p172
        %p362 = pneg %p169
        %p363 = pneg %p193
        %p364 = pneg %p190
        %p365 = pneg %p214
        %p366 = pneg %p211
        %p367 = pneg %p235
        %p368 = pneg %p232
        %p369 = pneg %p256
        %p370 = pneg %p253
        %p371 = pneg %p282
        %p372 = pneg %p279
        %s373 = sand.u32 %s269, 1
        %s374 = scalar_lea.sflag [#allocation3], %s373
        %s375 = sand.u32 %s269, 1
        %s376 = smul.addr %s375, 4
        %s377 = scalar_lea.vmem [#allocation2], %s376
        %p378 = scmp.lt.s32.totalorder %s25, 1
        %s379 = scalar_select %p378, %s25, 1
        %s380 = smul.addr %s379, 4
        %s381 = scalar_lea.vmem %s0, %s380
        %v383 = vld [vmem:[%s381] sm:$0xf]
        %v384 = vpack.c.bf16 %v383, %v383
        %v385 = vld [vmem:[%s1] sm:$0xf]
        %v386 = vld [vmem:[%s1 + $0x4] sm:$0xf]
        %v387 = vld [vmem:[%s2] sm:$0xff]
        %v388 = vld [vmem:[%s2 + $0x8] sm:$0xff]
        %390 = vset.pattern.permute.xlu0 0
        %391 = vperm.xlu0 %390, %v387
        %v392 = vpop.permute.xlu0 %391
        %395 = vset.pattern.permute.xlu0 0
        %396 = vperm.xlu0 %395, %v388
        %v397 = vpop.permute.xlu0 %396
        %v401 = vunpack.c.l.b16 %v385
        %v402 = vunpack.c.l.b16 %v386
        %v403 = vpack.c.b16 %v402, %v401
        %vm404 = vcmask 31744
        %v406 = vsel %vm404, %v403, 0
        %vm408 = vcmask 1041408
        %v410 = vsel %vm408, %v384, 0
        %412 = vmatprep.subr.bf16.mxu0 0
        %413 = vmatpush1.bf16.msra.mxu0 %v410
        %414 = vmatprep.subr.bf16.mxu0 0
        %415 = vmatpush1.bf16.msra.mxu0 0
        %416 = vmatprep.subr.bf16.mxu0 0
        %417 = vmatpush1.bf16.msra.mxu0 0
        %418 = vmatprep.subr.bf16.mxu0 0
        %419 = vmatpush1.bf16.msra.mxu0 0
        %420 = vmatprep.subr.bf16.mxu0 0
        %421 = vmatpush1.bf16.msra.mxu0 0
        %422 = vmatprep.subr.bf16.mxu0 0
        %423 = vmatpush1.bf16.msra.mxu0 0
        %424 = vmatprep.subr.bf16.mxu0 0
        %425 = vmatpush1.bf16.msra.mxu0 0
        %426 = vmatprep.subr.bf16.mxu0 0
        %427 = vmatpush1.bf16.msra.mxu0 0
        %428 = vmatprep.subr.bf16.mxu0 0
        %429 = vmatpush1.bf16.msra.mxu0 0
        %430 = vmatprep.subr.bf16.mxu0 0
        %431 = vmatpush1.bf16.msra.mxu0 0
        %432 = vmatprep.subr.bf16.mxu0 0
        %433 = vmatpush1.bf16.msra.mxu0 0
        %434 = vmatprep.subr.bf16.mxu0 0
        %435 = vmatpush1.bf16.msra.mxu0 0
        %436 = vmatprep.subr.bf16.mxu0 0
        %437 = vmatpush1.bf16.msra.mxu0 0
        %438 = vmatprep.subr.bf16.mxu0 0
        %439 = vmatpush1.bf16.msra.mxu0 0
        %440 = vmatprep.subr.bf16.mxu0 0
        %441 = vmatpush1.bf16.msra.mxu0 0
        %442 = vmatprep.subr.bf16.mxu0 0
        %443 = vmatpush1.bf16.msra.mxu0 0
        %444 = vmatprep.mubr.bf16.mxu0 0
        %445 = vmatmul.mubr.bf16.gmra.mrb[0].mxu0 %v406
        %v446 = vpop.f32.mrb[0].mxu0
        %v447 = vadd.f32 %v392, %v446
        %v448 = vpop.f32.mrb[0].mxu0
        %v449 = vpop.f32.mrb[0].mxu0
        %v450 = vadd.f32 %v397, %v449
        %v451 = vpop.f32.mrb[0].mxu0
        %452 = vdwg.mxu0
        %v453 = vlaneseq
        %v454 = vand.u32 %v453, 127
        %vm455 = vcmp.ge.s32.totalorder %v454, 1
        %vm456 = vcmp.ge.s32.totalorder %v454, 2
        %vm457 = vcmp.ge.s32.totalorder %v454, 4
        %vm458 = vcmask 1047680
        %459 = vrot.lane.b32.xlu0 %v447, 16
        %v460 = vpop.permute.xlu0 %459
        %v461 = vsel %vm458, %v460, %v447
        %462 = vrot.lane.b32.xlu0 %v450, 16
        %v463 = vpop.permute.xlu0 %462
        %v464 = vsel %vm458, %v463, %v450
        %465 = vrot.lane.b32.xlu0 %v461, 16
        %v466 = vpop.permute.xlu0 %465
        %467 = vrot.lane.b32.xlu0 %v464, 16
        %v468 = vpop.permute.xlu0 %467
        %v469 = vsel %vm458, %v466, %v447
        %v470 = vsel %vm458, %v468, %v450
        %v471 = vsel %vm455, 1, 0
        %vm472 = vcmp.eq.s32.totalorder %v471, 1
        %475 = vrot.lane.b32.xlu0 %v469, 113
        %v476 = vpop.permute.xlu0 %475
        %477 = vrot.lane.b32.xlu0 %v470, 113
        %v478 = vpop.permute.xlu0 %477
        %v481 = vsel %vm472, %v476, 0.0
        %v482 = vsel %vm472, %v478, 0.0
        %v483 = vpack.c.bf16 %v482, %v481
        %v484 = vld [vmem:[%s3] sm:$0xf]
        %v485 = vld [vmem:[%s3 + $0x4] sm:$0xf]
        %v486 = vld [vmem:[%s3 + $0x8] sm:$0xf]
        %v487 = vld [vmem:[%s3 + $0xc] sm:$0xf]
        %v488 = vpack.c.bf16 %v450, %v447
        %s489 = scalar_lea.vmem %s3, 16
        %v490 = vld [vmem:[%s489] sm:$0xf]
        %v491 = vld [vmem:[%s489 + $0x4] sm:$0xf]
        %v492 = vld [vmem:[%s489 + $0x8] sm:$0xf]
        %v493 = vld [vmem:[%s489 + $0xc] sm:$0xf]
        %v498 = vunpack.c.l.b16 %v490
        %v499 = vunpack.c.l.b16 %v491
        %v500 = vunpack.c.l.b16 %v492
        %v501 = vunpack.c.l.b16 %v493
        %v502 = vpack.c.b16 %v499, %v498
        %v503 = vpack.c.b16 %v501, %v500
        %vm504 = vcmask 130048
        %v506 = vsel %vm504, %v502, 0
        %v509 = vsel %vm504, %v503, 0
        %511 = vmatprep.subr.bf16.mxu0 0
        %512 = vmatpush1.bf16.msra.mxu0 %v488
        %513 = vmatprep.subr.bf16.mxu0 0
        %514 = vmatpush1.bf16.msra.mxu0 0
        %515 = vmatprep.subr.bf16.mxu0 0
        %516 = vmatpush1.bf16.msra.mxu0 0
        %517 = vmatprep.subr.bf16.mxu0 0
        %518 = vmatpush1.bf16.msra.mxu0 0
        %519 = vmatprep.subr.bf16.mxu0 0
        %520 = vmatpush1.bf16.msra.mxu0 0
        %521 = vmatprep.subr.bf16.mxu0 0
        %522 = vmatpush1.bf16.msra.mxu0 0
        %523 = vmatprep.subr.bf16.mxu0 0
        %524 = vmatpush1.bf16.msra.mxu0 0
        %525 = vmatprep.subr.bf16.mxu0 0
        %526 = vmatpush1.bf16.msra.mxu0 0
        %527 = vmatprep.subr.bf16.mxu0 0
        %528 = vmatpush1.bf16.msra.mxu0 0
        %529 = vmatprep.subr.bf16.mxu0 0
        %530 = vmatpush1.bf16.msra.mxu0 0
        %531 = vmatprep.subr.bf16.mxu0 0
        %532 = vmatpush1.bf16.msra.mxu0 0
        %533 = vmatprep.subr.bf16.mxu0 0
        %534 = vmatpush1.bf16.msra.mxu0 0
        %535 = vmatprep.subr.bf16.mxu0 0
        %536 = vmatpush1.bf16.msra.mxu0 0
        %537 = vmatprep.subr.bf16.mxu0 0
        %538 = vmatpush1.bf16.msra.mxu0 0
        %539 = vmatprep.subr.bf16.mxu0 0
        %540 = vmatpush1.bf16.msra.mxu0 0
        %541 = vmatprep.subr.bf16.mxu0 0
        %542 = vmatpush1.bf16.msra.mxu0 0
        %543 = vmatprep.mubr.bf16.mxu0 0
        %544 = vmatmul.mubr.bf16.gmra.mrb[0].mxu0 %v506
        %v545 = vpop.f32.mrb[0].mxu0
        %v546 = vadd.f32 0.0, %v545
        %v547 = vpop.f32.mrb[0].mxu0
        %v548 = vpop.f32.mrb[0].mxu0
        %v549 = vadd.f32 0.0, %v548
        %v550 = vpop.f32.mrb[0].mxu0
        %551 = vmatprep.mubr.bf16.mxu0 0
        %552 = vmatmul.mubr.bf16.gmra.mrb[0].mxu0 %v509
        %v553 = vpop.f32.mrb[0].mxu0
        %v554 = vadd.f32 0.0, %v553
        %v555 = vpop.f32.mrb[0].mxu0
        %v556 = vpop.f32.mrb[0].mxu0
        %v557 = vadd.f32 0.0, %v556
        %v558 = vpop.f32.mrb[0].mxu0
        %559 = vdwg.mxu0
        %v564 = vunpack.c.l.b16 %v484
        %v565 = vunpack.c.l.b16 %v485
        %v566 = vunpack.c.l.b16 %v486
        %v567 = vunpack.c.l.b16 %v487
        %v568 = vpack.c.b16 %v565, %v564
        %v569 = vpack.c.b16 %v567, %v566
        %v571 = vsel %vm504, %v568, 0
        %v574 = vsel %vm504, %v569, 0
        %576 = vmatprep.subr.bf16.mxu0 0
        %577 = vmatpush1.bf16.msra.mxu0 %v483
        %578 = vmatprep.subr.bf16.mxu0 0
        %579 = vmatpush1.bf16.msra.mxu0 0
        %580 = vmatprep.subr.bf16.mxu0 0
        %581 = vmatpush1.bf16.msra.mxu0 0
        %582 = vmatprep.subr.bf16.mxu0 0
        %583 = vmatpush1.bf16.msra.mxu0 0
        %584 = vmatprep.subr.bf16.mxu0 0
        %585 = vmatpush1.bf16.msra.mxu0 0
        %586 = vmatprep.subr.bf16.mxu0 0
        %587 = vmatpush1.bf16.msra.mxu0 0
        %588 = vmatprep.subr.bf16.mxu0 0
        %589 = vmatpush1.bf16.msra.mxu0 0
        %590 = vmatprep.subr.bf16.mxu0 0
        %591 = vmatpush1.bf16.msra.mxu0 0
        %592 = vmatprep.subr.bf16.mxu0 0
        %593 = vmatpush1.bf16.msra.mxu0 0
        %594 = vmatprep.subr.bf16.mxu0 0
        %595 = vmatpush1.bf16.msra.mxu0 0
        %596 = vmatprep.subr.bf16.mxu0 0
        %597 = vmatpush1.bf16.msra.mxu0 0
        %598 = vmatprep.subr.bf16.mxu0 0
        %599 = vmatpush1.bf16.msra.mxu0 0
        %600 = vmatprep.subr.bf16.mxu0 0
        %601 = vmatpush1.bf16.msra.mxu0 0
        %602 = vmatprep.subr.bf16.mxu0 0
        %603 = vmatpush1.bf16.msra.mxu0 0
        %604 = vmatprep.subr.bf16.mxu0 0
        %605 = vmatpush1.bf16.msra.mxu0 0
        %606 = vmatprep.subr.bf16.mxu0 0
        %607 = vmatpush1.bf16.msra.mxu0 0
        %608 = vmatprep.mubr.bf16.mxu0 0
        %609 = vmatmul.mubr.bf16.gmra.mrb[0].mxu0 %v571
        %v610 = vpop.f32.mrb[0].mxu0
        %v611 = vadd.f32 %v546, %v610
        %v612 = vpop.f32.mrb[0].mxu0
        %v613 = vpop.f32.mrb[0].mxu0
        %v614 = vadd.f32 %v549, %v613
        %v615 = vpop.f32.mrb[0].mxu0
        %616 = vmatprep.mubr.bf16.mxu0 0
        %617 = vmatmul.mubr.bf16.gmra.mrb[0].mxu0 %v574
        %v618 = vpop.f32.mrb[0].mxu0
        %v619 = vadd.f32 %v554, %v618
        %v620 = vpop.f32.mrb[0].mxu0
        %v621 = vpop.f32.mrb[0].mxu0
        %v622 = vadd.f32 %v557, %v621
        %v623 = vpop.f32.mrb[0].mxu0
        %624 = vdwg.mxu0
        %v625 = vld [vmem:[%s4] sm:$0xff]
        %v626 = vld [vmem:[%s4 + $0x8] sm:$0xff]
        %v627 = vld [vmem:[%s4 + $0x10] sm:$0xff]
        %v628 = vld [vmem:[%s4 + $0x18] sm:$0xff]
        %630 = vset.pattern.permute.xlu0 0
        %631 = vperm.xlu0 %630, %v625
        %v632 = vpop.permute.xlu0 %631
        %635 = vset.pattern.permute.xlu0 0
        %636 = vperm.xlu0 %635, %v626
        %v637 = vpop.permute.xlu0 %636
        %640 = vset.pattern.permute.xlu0 0
        %641 = vperm.xlu0 %640, %v627
        %v642 = vpop.permute.xlu0 %641
        %645 = vset.pattern.permute.xlu0 0
        %646 = vperm.xlu0 %645, %v628
        %v647 = vpop.permute.xlu0 %646
        %v649 = vadd.f32 %v611, %v632
        %v650 = vadd.f32 %v614, %v637
        %v651 = vadd.f32 %v619, %v642
        %v652 = vadd.f32 %v622, %v647
        %v653 = vtanh.pop %v649
        %v654 = vtanh.pop %v650
        %v655 = vmul.f32 %v651, 0.5
        %v656 = vmul.f32 %v652, 0.5
        %v657 = vtanh.pop %v655
        %v658 = vtanh.pop %v656
        %v659 = vadd.f32 %v657, 1.0
        %v660 = vadd.f32 %v658, 1.0
        %v661 = vmul.f32 %v659, 0.5
        %v662 = vmul.f32 %v660, 0.5
        %v663 = vmul.f32 %v653, %v661
        %v664 = vmul.f32 %v654, %v662
        %v665 = vld [vmem:[%s5] sm:$0xf]
        %v666 = vld [vmem:[%s5 + $0x4] sm:$0xf]
        %v667 = vld [vmem:[%s5 + $0x8] sm:$0xf]
        %v668 = vld [vmem:[%s5 + $0xc] sm:$0xf]
        %v669 = vpack.c.bf16 %v664, %v663
        %v670 = vld [vmem:[%s6] sm:$0xff]
        %v671 = vld [vmem:[%s6 + $0x8] sm:$0xff]
        %v672 = vld [vmem:[%s6 + $0x10] sm:$0xff]
        %v673 = vld [vmem:[%s6 + $0x18] sm:$0xff]
        %675 = vset.pattern.permute.xlu0 0
        %676 = vperm.xlu0 %675, %v670
        %v677 = vpop.permute.xlu0 %676
        %680 = vset.pattern.permute.xlu0 0
        %681 = vperm.xlu0 %680, %v671
        %v682 = vpop.permute.xlu0 %681
        %685 = vset.pattern.permute.xlu0 0
        %686 = vperm.xlu0 %685, %v672
        %v687 = vpop.permute.xlu0 %686
        %690 = vset.pattern.permute.xlu0 0
        %691 = vperm.xlu0 %690, %v673
        %v692 = vpop.permute.xlu0 %691
        %v698 = vunpack.c.l.b16 %v665
        %v699 = vunpack.c.l.b16 %v666
        %v700 = vunpack.c.l.b16 %v667
        %v701 = vunpack.c.l.b16 %v668
        %v702 = vpack.c.b16 %v699, %v698
        %v703 = vpack.c.b16 %v701, %v700
        %v705 = vsel %vm504, %v702, 0
        %v708 = vsel %vm504, %v703, 0
        %710 = vmatprep.subr.bf16.mxu0 0
        %711 = vmatpush1.bf16.msra.mxu0 %v669
        %712 = vmatprep.subr.bf16.mxu0 0
        %713 = vmatpush1.bf16.msra.mxu0 0
        %714 = vmatprep.subr.bf16.mxu0 0
        %715 = vmatpush1.bf16.msra.mxu0 0
        %716 = vmatprep.subr.bf16.mxu0 0
        %717 = vmatpush1.bf16.msra.mxu0 0
        %718 = vmatprep.subr.bf16.mxu0 0
        %719 = vmatpush1.bf16.msra.mxu0 0
        %720 = vmatprep.subr.bf16.mxu0 0
        %721 = vmatpush1.bf16.msra.mxu0 0
        %722 = vmatprep.subr.bf16.mxu0 0
        %723 = vmatpush1.bf16.msra.mxu0 0
        %724 = vmatprep.subr.bf16.mxu0 0
        %725 = vmatpush1.bf16.msra.mxu0 0
        %726 = vmatprep.subr.bf16.mxu0 0
        %727 = vmatpush1.bf16.msra.mxu0 0
        %728 = vmatprep.subr.bf16.mxu0 0
        %729 = vmatpush1.bf16.msra.mxu0 0
        %730 = vmatprep.subr.bf16.mxu0 0
        %731 = vmatpush1.bf16.msra.mxu0 0
        %732 = vmatprep.subr.bf16.mxu0 0
        %733 = vmatpush1.bf16.msra.mxu0 0
        %734 = vmatprep.subr.bf16.mxu0 0
        %735 = vmatpush1.bf16.msra.mxu0 0
        %736 = vmatprep.subr.bf16.mxu0 0
        %737 = vmatpush1.bf16.msra.mxu0 0
        %738 = vmatprep.subr.bf16.mxu0 0
        %739 = vmatpush1.bf16.msra.mxu0 0
        %740 = vmatprep.subr.bf16.mxu0 0
        %741 = vmatpush1.bf16.msra.mxu0 0
        %742 = vmatprep.mubr.bf16.mxu0 0
        %743 = vmatmul.mubr.bf16.gmra.mrb[0].mxu0 %v705
        %v744 = vpop.f32.mrb[0].mxu0
        %v745 = vadd.f32 %v677, %v744
        %v746 = vpop.f32.mrb[0].mxu0
        %v747 = vpop.f32.mrb[0].mxu0
        %v748 = vadd.f32 %v682, %v747
        %v749 = vpop.f32.mrb[0].mxu0
        %750 = vmatprep.mubr.bf16.mxu0 0
        %751 = vmatmul.mubr.bf16.gmra.mrb[0].mxu0 %v708
        %v752 = vpop.f32.mrb[0].mxu0
        %v753 = vadd.f32 %v687, %v752
        %v754 = vpop.f32.mrb[0].mxu0
        %v755 = vpop.f32.mrb[0].mxu0
        %v756 = vadd.f32 %v692, %v755
        %v757 = vpop.f32.mrb[0].mxu0
        %758 = vdwg.mxu0
        %v759 = vadd.f32 %v447, %v745
        %v760 = vadd.f32 %v450, %v748
        %v761 = vadd.f32 %v753, 0.0
        %v762 = vadd.f32 %v756, 0.0
        %763 = vrot.lane.b32.xlu0 %v759, 16
        %v764 = vpop.permute.xlu0 %763
        %v765 = vsel %vm458, %v764, %v759
        %766 = vrot.lane.b32.xlu0 %v760, 16
        %v767 = vpop.permute.xlu0 %766
        %v768 = vsel %vm458, %v767, %v760
        %769 = vrot.lane.b32.xlu0 %v765, 16
        %v770 = vpop.permute.xlu0 %769
        %771 = vrot.lane.b32.xlu0 %v768, 16
        %v772 = vpop.permute.xlu0 %771
        %v773 = vsel %vm458, %v770, %v759
        %v774 = vsel %vm458, %v772, %v760
        %v775 = vsel %vm456, 1, 0
        %vm776 = vcmp.eq.s32.totalorder %v775, 1
        %779 = vrot.lane.b32.xlu0 %v773, 114
        %v780 = vpop.permute.xlu0 %779
        %781 = vrot.lane.b32.xlu0 %v774, 114
        %v782 = vpop.permute.xlu0 %781
        %v785 = vsel %vm776, %v780, 0.0
        %v786 = vsel %vm776, %v782, 0.0
        %v787 = vpack.c.bf16 %v786, %v785
        %s788 = scalar_lea.vmem %s3, 32
        %v789 = vld [vmem:[%s788] sm:$0xf]
        %v790 = vld [vmem:[%s788 + $0x4] sm:$0xf]
        %v791 = vld [vmem:[%s788 + $0x8] sm:$0xf]
        %v792 = vld [vmem:[%s788 + $0xc] sm:$0xf]
        %v793 = vpack.c.bf16 %v760, %v759
        %s794 = scalar_lea.vmem %s3, 48
        %v795 = vld [vmem:[%s794] sm:$0xf]
        %v796 = vld [vmem:[%s794 + $0x4] sm:$0xf]
        %v797 = vld [vmem:[%s794 + $0x8] sm:$0xf]
        %v798 = vld [vmem:[%s794 + $0xc] sm:$0xf]
        %v803 = vunpack.c.l.b16 %v795
        %v804 = vunpack.c.l.b16 %v796
        %v805 = vunpack.c.l.b16 %v797
        %v806 = vunpack.c.l.b16 %v798
        %v807 = vpack.c.b16 %v804, %v803
        %v808 = vpack.c.b16 %v806, %v805
        %v810 = vsel %vm504, %v807, 0
        %v813 = vsel %vm504, %v808, 0
        %815 = vmatprep.subr.bf16.mxu0 0
        %816 = vmatpush1.bf16.msra.mxu0 %v793
        %817 = vmatprep.subr.bf16.mxu0 0
        %818 = vmatpush1.bf16.msra.mxu0 0
        %819 = vmatprep.subr.bf16.mxu0 0
        %820 = vmatpush1.bf16.msra.mxu0 0
        %821 = vmatprep.subr.bf16.mxu0 0
        %822 = vmatpush1.bf16.msra.mxu0 0
        %823 = vmatprep.subr.bf16.mxu0 0
        %824 = vmatpush1.bf16.msra.mxu0 0
        %825 = vmatprep.subr.bf16.mxu0 0
        %826 = vmatpush1.bf16.msra.mxu0 0
        %827 = vmatprep.subr.bf16.mxu0 0
        %828 = vmatpush1.bf16.msra.mxu0 0
        %829 = vmatprep.subr.bf16.mxu0 0
        %830 = vmatpush1.bf16.msra.mxu0 0
        %831 = vmatprep.subr.bf16.mxu0 0
        %832 = vmatpush1.bf16.msra.mxu0 0
        %833 = vmatprep.subr.bf16.mxu0 0
        %834 = vmatpush1.bf16.msra.mxu0 0
        %835 = vmatprep.subr.bf16.mxu0 0
        %836 = vmatpush1.bf16.msra.mxu0 0
        %837 = vmatprep.subr.bf16.mxu0 0
        %838 = vmatpush1.bf16.msra.mxu0 0
        %839 = vmatprep.subr.bf16.mxu0 0
        %840 = vmatpush1.bf16.msra.mxu0 0
        %841 = vmatprep.subr.bf16.mxu0 0
        %842 = vmatpush1.bf16.msra.mxu0 0
        %843 = vmatprep.subr.bf16.mxu0 0
        %844 = vmatpush1.bf16.msra.mxu0 0
        %845 = vmatprep.subr.bf16.mxu0 0
        %846 = vmatpush1.bf16.msra.mxu0 0
        %847 = vmatprep.mubr.bf16.mxu0 0
        %848 = vmatmul.mubr.bf16.gmra.mrb[0].mxu0 %v810
        %v849 = vpop.f32.mrb[0].mxu0
        %v850 = vadd.f32 0.0, %v849
        %v851 = vpop.f32.mrb[0].mxu0
        %v852 = vpop.f32.mrb[0].mxu0
        %v853 = vadd.f32 0.0, %v852
        %v854 = vpop.f32.mrb[0].mxu0
        %855 = vmatprep.mubr.bf16.mxu0 0
        %856 = vmatmul.mubr.bf16.gmra.mrb[0].mxu0 %v813
        %v857 = vpop.f32.mrb[0].mxu0
        %v858 = vadd.f32 0.0, %v857
        %v859 = vpop.f32.mrb[0].mxu0
        %v860 = vpop.f32.mrb[0].mxu0
        %v861 = vadd.f32 0.0, %v860
        %v862 = vpop.f32.mrb[0].mxu0
        %863 = vdwg.mxu0
        %v868 = vunpack.c.l.b16 %v789
        %v869 = vunpack.c.l.b16 %v790
        %v870 = vunpack.c.l.b16 %v791
        %v871 = vunpack.c.l.b16 %v792
        %v872 = vpack.c.b16 %v869, %v868
        %v873 = vpack.c.b16 %v871, %v870
        %v875 = vsel %vm504, %v872, 0
        %v878 = vsel %vm504, %v873, 0
        %880 = vmatprep.subr.bf16.mxu0 0
        %881 = vmatpush1.bf16.msra.mxu0 %v787
        %882 = vmatprep.subr.bf16.mxu0 0
        %883 = vmatpush1.bf16.msra.mxu0 0
        %884 = vmatprep.subr.bf16.mxu0 0
        %885 = vmatpush1.bf16.msra.mxu0 0
        %886 = vmatprep.subr.bf16.mxu0 0
        %887 = vmatpush1.bf16.msra.mxu0 0
        %888 = vmatprep.subr.bf16.mxu0 0
        %889 = vmatpush1.bf16.msra.mxu0 0
        %890 = vmatprep.subr.bf16.mxu0 0
        %891 = vmatpush1.bf16.msra.mxu0 0
        %892 = vmatprep.subr.bf16.mxu0 0
        %893 = vmatpush1.bf16.msra.mxu0 0
        %894 = vmatprep.subr.bf16.mxu0 0
        %895 = vmatpush1.bf16.msra.mxu0 0
        %896 = vmatprep.subr.bf16.mxu0 0
        %897 = vmatpush1.bf16.msra.mxu0 0
        %898 = vmatprep.subr.bf16.mxu0 0
        %899 = vmatpush1.bf16.msra.mxu0 0
        %900 = vmatprep.subr.bf16.mxu0 0
        %901 = vmatpush1.bf16.msra.mxu0 0
        %902 = vmatprep.subr.bf16.mxu0 0
        %903 = vmatpush1.bf16.msra.mxu0 0
        %904 = vmatprep.subr.bf16.mxu0 0
        %905 = vmatpush1.bf16.msra.mxu0 0
        %906 = vmatprep.subr.bf16.mxu0 0
        %907 = vmatpush1.bf16.msra.mxu0 0
        %908 = vmatprep.subr.bf16.mxu0 0
        %909 = vmatpush1.bf16.msra.mxu0 0
        %910 = vmatprep.subr.bf16.mxu0 0
        %911 = vmatpush1.bf16.msra.mxu0 0
        %912 = vmatprep.mubr.bf16.mxu0 0
        %913 = vmatmul.mubr.bf16.gmra.mrb[0].mxu0 %v875
        %v914 = vpop.f32.mrb[0].mxu0
        %v915 = vadd.f32 %v850, %v914
        %v916 = vpop.f32.mrb[0].mxu0
        %v917 = vpop.f32.mrb[0].mxu0
        %v918 = vadd.f32 %v853, %v917
        %v919 = vpop.f32.mrb[0].mxu0
        %920 = vmatprep.mubr.bf16.mxu0 0
        %921 = vmatmul.mubr.bf16.gmra.mrb[0].mxu0 %v878
        %v922 = vpop.f32.mrb[0].mxu0
        %v923 = vadd.f32 %v858, %v922
        %v924 = vpop.f32.mrb[0].mxu0
        %v925 = vpop.f32.mrb[0].mxu0
        %v926 = vadd.f32 %v861, %v925
        %v927 = vpop.f32.mrb[0].mxu0
        %928 = vdwg.mxu0
        %s929 = scalar_lea.vmem %s4, 32
        %v930 = vld [vmem:[%s929] sm:$0xff]
        %v931 = vld [vmem:[%s929 + $0x8] sm:$0xff]
        %v932 = vld [vmem:[%s929 + $0x10] sm:$0xff]
        %v933 = vld [vmem:[%s929 + $0x18] sm:$0xff]
        %935 = vset.pattern.permute.xlu0 0
        %936 = vperm.xlu0 %935, %v930
        %v937 = vpop.permute.xlu0 %936
        %940 = vset.pattern.permute.xlu0 0
        %941 = vperm.xlu0 %940, %v931
        %v942 = vpop.permute.xlu0 %941
        %945 = vset.pattern.permute.xlu0 0
        %946 = vperm.xlu0 %945, %v932
        %v947 = vpop.permute.xlu0 %946
        %950 = vset.pattern.permute.xlu0 0
        %951 = vperm.xlu0 %950, %v933
        %v952 = vpop.permute.xlu0 %951
        %v954 = vadd.f32 %v915, %v937
        %v955 = vadd.f32 %v918, %v942
        %v956 = vadd.f32 %v923, %v947
        %v957 = vadd.f32 %v926, %v952
        %v958 = vtanh.pop %v954
        %v959 = vtanh.pop %v955
        %v960 = vmul.f32 %v956, 0.5
        %v961 = vmul.f32 %v957, 0.5
        %v962 = vtanh.pop %v960
        %v963 = vtanh.pop %v961
        %v964 = vadd.f32 %v962, 1.0
        %v965 = vadd.f32 %v963, 1.0
        %v966 = vmul.f32 %v964, 0.5
        %v967 = vmul.f32 %v965, 0.5
        %v968 = vmul.f32 %v958, %v966
        %v969 = vmul.f32 %v959, %v967
        %s970 = scalar_lea.vmem %s5, 16
        %v971 = vld [vmem:[%s970] sm:$0xf]
        %v972 = vld [vmem:[%s970 + $0x4] sm:$0xf]
        %v973 = vld [vmem:[%s970 + $0x8] sm:$0xf]
        %v974 = vld [vmem:[%s970 + $0xc] sm:$0xf]
        %v975 = vpack.c.bf16 %v969, %v968
        %s976 = scalar_lea.vmem %s6, 32
        %v977 = vld [vmem:[%s976] sm:$0xff]
        %v978 = vld [vmem:[%s976 + $0x8] sm:$0xff]
        %v979 = vld [vmem:[%s976 + $0x10] sm:$0xff]
        %v980 = vld [vmem:[%s976 + $0x18] sm:$0xff]
        %982 = vset.pattern.permute.xlu0 0
        %983 = vperm.xlu0 %982, %v977
        %v984 = vpop.permute.xlu0 %983
        %987 = vset.pattern.permute.xlu0 0
        %988 = vperm.xlu0 %987, %v978
        %v989 = vpop.permute.xlu0 %988
        %992 = vset.pattern.permute.xlu0 0
        %993 = vperm.xlu0 %992, %v979
        %v994 = vpop.permute.xlu0 %993
        %997 = vset.pattern.permute.xlu0 0
        %998 = vperm.xlu0 %997, %v980
        %v999 = vpop.permute.xlu0 %998
        %v1005 = vunpack.c.l.b16 %v971
        %v1006 = vunpack.c.l.b16 %v972
        %v1007 = vunpack.c.l.b16 %v973
        %v1008 = vunpack.c.l.b16 %v974
        %v1009 = vpack.c.b16 %v1006, %v1005
        %v1010 = vpack.c.b16 %v1008, %v1007
        %v1012 = vsel %vm504, %v1009, 0
        %v1015 = vsel %vm504, %v1010, 0
        %1017 = vmatprep.subr.bf16.mxu0 0
        %1018 = vmatpush1.bf16.msra.mxu0 %v975
        %1019 = vmatprep.subr.bf16.mxu0 0
        %1020 = vmatpush1.bf16.msra.mxu0 0
        %1021 = vmatprep.subr.bf16.mxu0 0
        %1022 = vmatpush1.bf16.msra.mxu0 0
        %1023 = vmatprep.subr.bf16.mxu0 0
        %1024 = vmatpush1.bf16.msra.mxu0 0
        %1025 = vmatprep.subr.bf16.mxu0 0
        %1026 = vmatpush1.bf16.msra.mxu0 0
        %1027 = vmatprep.subr.bf16.mxu0 0
        %1028 = vmatpush1.bf16.msra.mxu0 0
        %1029 = vmatprep.subr.bf16.mxu0 0
        %1030 = vmatpush1.bf16.msra.mxu0 0
        %1031 = vmatprep.subr.bf16.mxu0 0
        %1032 = vmatpush1.bf16.msra.mxu0 0
        %1033 = vmatprep.subr.bf16.mxu0 0
        %1034 = vmatpush1.bf16.msra.mxu0 0
        %1035 = vmatprep.subr.bf16.mxu0 0
        %1036 = vmatpush1.bf16.msra.mxu0 0
        %1037 = vmatprep.subr.bf16.mxu0 0
        %1038 = vmatpush1.bf16.msra.mxu0 0
        %1039 = vmatprep.subr.bf16.mxu0 0
        %1040 = vmatpush1.bf16.msra.mxu0 0
        %1041 = vmatprep.subr.bf16.mxu0 0
        %1042 = vmatpush1.bf16.msra.mxu0 0
        %1043 = vmatprep.subr.bf16.mxu0 0
        %1044 = vmatpush1.bf16.msra.mxu0 0
        %1045 = vmatprep.subr.bf16.mxu0 0
        %1046 = vmatpush1.bf16.msra.mxu0 0
        %1047 = vmatprep.subr.bf16.mxu0 0
        %1048 = vmatpush1.bf16.msra.mxu0 0
        %1049 = vmatprep.mubr.bf16.mxu0 0
        %1050 = vmatmul.mubr.bf16.gmra.mrb[0].mxu0 %v1012
        %v1051 = vpop.f32.mrb[0].mxu0
        %v1052 = vadd.f32 %v984, %v1051
        %v1053 = vpop.f32.mrb[0].mxu0
        %v1054 = vpop.f32.mrb[0].mxu0
        %v1055 = vadd.f32 %v989, %v1054
        %v1056 = vpop.f32.mrb[0].mxu0
        %1057 = vmatprep.mubr.bf16.mxu0 0
        %1058 = vmatmul.mubr.bf16.gmra.mrb[0].mxu0 %v1015
        %v1059 = vpop.f32.mrb[0].mxu0
        %v1060 = vadd.f32 %v994, %v1059
        %v1061 = vpop.f32.mrb[0].mxu0
        %v1062 = vpop.f32.mrb[0].mxu0
        %v1063 = vadd.f32 %v999, %v1062
        %v1064 = vpop.f32.mrb[0].mxu0
        %1065 = vdwg.mxu0
        %v1066 = vadd.f32 %v759, %v1052
        %v1067 = vadd.f32 %v760, %v1055
        %v1068 = vadd.f32 %v761, %v1060
        %v1069 = vadd.f32 %v762, %v1063
        %1070 = vrot.lane.b32.xlu0 %v1066, 16
        %v1071 = vpop.permute.xlu0 %1070
        %v1072 = vsel %vm458, %v1071, %v1066
        %1073 = vrot.lane.b32.xlu0 %v1067, 16
        %v1074 = vpop.permute.xlu0 %1073
        %v1075 = vsel %vm458, %v1074, %v1067
        %1076 = vrot.lane.b32.xlu0 %v1072, 16
        %v1077 = vpop.permute.xlu0 %1076
        %1078 = vrot.lane.b32.xlu0 %v1075, 16
        %v1079 = vpop.permute.xlu0 %1078
        %v1080 = vsel %vm458, %v1077, %v1066
        %v1081 = vsel %vm458, %v1079, %v1067
        %v1082 = vsel %vm457, 1, 0
        %vm1083 = vcmp.eq.s32.totalorder %v1082, 1
        %1086 = vrot.lane.b32.xlu0 %v1080, 116
        %v1087 = vpop.permute.xlu0 %1086
        %1088 = vrot.lane.b32.xlu0 %v1081, 116
        %v1089 = vpop.permute.xlu0 %1088
        %v1092 = vsel %vm1083, %v1087, 0.0
        %v1093 = vsel %vm1083, %v1089, 0.0
        %v1094 = vpack.c.bf16 %v1093, %v1092
        %s1095 = scalar_lea.vmem %s3, 64
        %v1096 = vld [vmem:[%s1095] sm:$0xf]
        %v1097 = vld [vmem:[%s1095 + $0x4] sm:$0xf]
        %v1098 = vld [vmem:[%s1095 + $0x8] sm:$0xf]
        %v1099 = vld [vmem:[%s1095 + $0xc] sm:$0xf]
        %v1100 = vpack.c.bf16 %v1067, %v1066
        %s1101 = scalar_lea.vmem %s3, 80
        %v1102 = vld [vmem:[%s1101] sm:$0xf]
        %v1103 = vld [vmem:[%s1101 + $0x4] sm:$0xf]
        %v1104 = vld [vmem:[%s1101 + $0x8] sm:$0xf]
        %v1105 = vld [vmem:[%s1101 + $0xc] sm:$0xf]
        %v1110 = vunpack.c.l.b16 %v1102
        %v1111 = vunpack.c.l.b16 %v1103
        %v1112 = vunpack.c.l.b16 %v1104
        %v1113 = vunpack.c.l.b16 %v1105
        %v1114 = vpack.c.b16 %v1111, %v1110
        %v1115 = vpack.c.b16 %v1113, %v1112
        %v1117 = vsel %vm504, %v1114, 0
        %v1120 = vsel %vm504, %v1115, 0
        %1122 = vmatprep.subr.bf16.mxu0 0
        %1123 = vmatpush1.bf16.msra.mxu0 %v1100
        %1124 = vmatprep.subr.bf16.mxu0 0
        %1125 = vmatpush1.bf16.msra.mxu0 0
        %1126 = vmatprep.subr.bf16.mxu0 0
        %1127 = vmatpush1.bf16.msra.mxu0 0
        %1128 = vmatprep.subr.bf16.mxu0 0
        %1129 = vmatpush1.bf16.msra.mxu0 0
        %1130 = vmatprep.subr.bf16.mxu0 0
        %1131 = vmatpush1.bf16.msra.mxu0 0
        %1132 = vmatprep.subr.bf16.mxu0 0
        %1133 = vmatpush1.bf16.msra.mxu0 0
        %1134 = vmatprep.subr.bf16.mxu0 0
        %1135 = vmatpush1.bf16.msra.mxu0 0
        %1136 = vmatprep.subr.bf16.mxu0 0
        %1137 = vmatpush1.bf16.msra.mxu0 0
        %1138 = vmatprep.subr.bf16.mxu0 0
        %1139 = vmatpush1.bf16.msra.mxu0 0
        %1140 = vmatprep.subr.bf16.mxu0 0
        %1141 = vmatpush1.bf16.msra.mxu0 0
        %1142 = vmatprep.subr.bf16.mxu0 0
        %1143 = vmatpush1.bf16.msra.mxu0 0
        %1144 = vmatprep.subr.bf16.mxu0 0
        %1145 = vmatpush1.bf16.msra.mxu0 0
        %1146 = vmatprep.subr.bf16.mxu0 0
        %1147 = vmatpush1.bf16.msra.mxu0 0
        %1148 = vmatprep.subr.bf16.mxu0 0
        %1149 = vmatpush1.bf16.msra.mxu0 0
        %1150 = vmatprep.subr.bf16.mxu0 0
        %1151 = vmatpush1.bf16.msra.mxu0 0
        %1152 = vmatprep.subr.bf16.mxu0 0
        %1153 = vmatpush1.bf16.msra.mxu0 0
        %1154 = vmatprep.mubr.bf16.mxu0 0
        %1155 = vmatmul.mubr.bf16.gmra.mrb[0].mxu0 %v1117
        %v1156 = vpop.f32.mrb[0].mxu0
        %v1157 = vadd.f32 0.0, %v1156
        %v1158 = vpop.f32.mrb[0].mxu0
        %v1159 = vpop.f32.mrb[0].mxu0
        %v1160 = vadd.f32 0.0, %v1159
        %v1161 = vpop.f32.mrb[0].mxu0
        %1162 = vmatprep.mubr.bf16.mxu0 0
        %1163 = vmatmul.mubr.bf16.gmra.mrb[0].mxu0 %v1120
        %v1164 = vpop.f32.mrb[0].mxu0
        %v1165 = vadd.f32 0.0, %v1164
        %v1166 = vpop.f32.mrb[0].mxu0
        %v1167 = vpop.f32.mrb[0].mxu0
        %v1168 = vadd.f32 0.0, %v1167
        %v1169 = vpop.f32.mrb[0].mxu0
        %1170 = vdwg.mxu0
        %v1175 = vunpack.c.l.b16 %v1096
        %v1176 = vunpack.c.l.b16 %v1097
        %v1177 = vunpack.c.l.b16 %v1098
        %v1178 = vunpack.c.l.b16 %v1099
        %v1179 = vpack.c.b16 %v1176, %v1175
        %v1180 = vpack.c.b16 %v1178, %v1177
        %v1182 = vsel %vm504, %v1179, 0
        %v1185 = vsel %vm504, %v1180, 0
        %1187 = vmatprep.subr.bf16.mxu0 0
        %1188 = vmatpush1.bf16.msra.mxu0 %v1094
        %1189 = vmatprep.subr.bf16.mxu0 0
        %1190 = vmatpush1.bf16.msra.mxu0 0
        %1191 = vmatprep.subr.bf16.mxu0 0
        %1192 = vmatpush1.bf16.msra.mxu0 0
        %1193 = vmatprep.subr.bf16.mxu0 0
        %1194 = vmatpush1.bf16.msra.mxu0 0
        %1195 = vmatprep.subr.bf16.mxu0 0
        %1196 = vmatpush1.bf16.msra.mxu0 0
        %1197 = vmatprep.subr.bf16.mxu0 0
        %1198 = vmatpush1.bf16.msra.mxu0 0
        %1199 = vmatprep.subr.bf16.mxu0 0
        %1200 = vmatpush1.bf16.msra.mxu0 0
        %1201 = vmatprep.subr.bf16.mxu0 0
        %1202 = vmatpush1.bf16.msra.mxu0 0
        %1203 = vmatprep.subr.bf16.mxu0 0
        %1204 = vmatpush1.bf16.msra.mxu0 0
        %1205 = vmatprep.subr.bf16.mxu0 0
        %1206 = vmatpush1.bf16.msra.mxu0 0
        %1207 = vmatprep.subr.bf16.mxu0 0
        %1208 = vmatpush1.bf16.msra.mxu0 0
        %1209 = vmatprep.subr.bf16.mxu0 0
        %1210 = vmatpush1.bf16.msra.mxu0 0
        %1211 = vmatprep.subr.bf16.mxu0 0
        %1212 = vmatpush1.bf16.msra.mxu0 0
        %1213 = vmatprep.subr.bf16.mxu0 0
        %1214 = vmatpush1.bf16.msra.mxu0 0
        %1215 = vmatprep.subr.bf16.mxu0 0
        %1216 = vmatpush1.bf16.msra.mxu0 0
        %1217 = vmatprep.subr.bf16.mxu0 0
        %1218 = vmatpush1.bf16.msra.mxu0 0
        %1219 = vmatprep.mubr.bf16.mxu0 0
        %1220 = vmatmul.mubr.bf16.gmra.mrb[0].mxu0 %v1182
        %v1221 = vpop.f32.mrb[0].mxu0
        %v1222 = vadd.f32 %v1157, %v1221
        %v1223 = vpop.f32.mrb[0].mxu0
        %v1224 = vpop.f32.mrb[0].mxu0
        %v1225 = vadd.f32 %v1160, %v1224
        %v1226 = vpop.f32.mrb[0].mxu0
        %1227 = vmatprep.mubr.bf16.mxu0 0
        %1228 = vmatmul.mubr.bf16.gmra.mrb[0].mxu0 %v1185
        %v1229 = vpop.f32.mrb[0].mxu0
        %v1230 = vadd.f32 %v1165, %v1229
        %v1231 = vpop.f32.mrb[0].mxu0
        %v1232 = vpop.f32.mrb[0].mxu0
        %v1233 = vadd.f32 %v1168, %v1232
        %v1234 = vpop.f32.mrb[0].mxu0
        %1235 = vdwg.mxu0
        %s1236 = scalar_lea.vmem %s4, 64
        %v1237 = vld [vmem:[%s1236] sm:$0xff]
        %v1238 = vld [vmem:[%s1236 + $0x8] sm:$0xff]
        %v1239 = vld [vmem:[%s1236 + $0x10] sm:$0xff]
        %v1240 = vld [vmem:[%s1236 + $0x18] sm:$0xff]
        %1242 = vset.pattern.permute.xlu0 0
        %1243 = vperm.xlu0 %1242, %v1237
        %v1244 = vpop.permute.xlu0 %1243
        %1247 = vset.pattern.permute.xlu0 0
        %1248 = vperm.xlu0 %1247, %v1238
        %v1249 = vpop.permute.xlu0 %1248
        %1252 = vset.pattern.permute.xlu0 0
        %1253 = vperm.xlu0 %1252, %v1239
        %v1254 = vpop.permute.xlu0 %1253
        %1257 = vset.pattern.permute.xlu0 0
        %1258 = vperm.xlu0 %1257, %v1240
        %v1259 = vpop.permute.xlu0 %1258
        %v1261 = vadd.f32 %v1222, %v1244
        %v1262 = vadd.f32 %v1225, %v1249
        %v1263 = vadd.f32 %v1230, %v1254
        %v1264 = vadd.f32 %v1233, %v1259
        %v1265 = vtanh.pop %v1261
        %v1266 = vtanh.pop %v1262
        %v1267 = vmul.f32 %v1263, 0.5
        %v1268 = vmul.f32 %v1264, 0.5
        %v1269 = vtanh.pop %v1267
        %v1270 = vtanh.pop %v1268
        %v1271 = vadd.f32 %v1269, 1.0
        %v1272 = vadd.f32 %v1270, 1.0
        %v1273 = vmul.f32 %v1271, 0.5
        %v1274 = vmul.f32 %v1272, 0.5
        %v1275 = vmul.f32 %v1265, %v1273
        %v1276 = vmul.f32 %v1266, %v1274
        %s1277 = scalar_lea.vmem %s5, 32
        %v1278 = vld [vmem:[%s1277] sm:$0xf]
        %v1279 = vld [vmem:[%s1277 + $0x4] sm:$0xf]
        %v1280 = vld [vmem:[%s1277 + $0x8] sm:$0xf]
        %v1281 = vld [vmem:[%s1277 + $0xc] sm:$0xf]
        %v1282 = vpack.c.bf16 %v1276, %v1275
        %s1283 = scalar_lea.vmem %s6, 64
        %v1284 = vld [vmem:[%s1283] sm:$0xff]
        %v1285 = vld [vmem:[%s1283 + $0x8] sm:$0xff]
        %v1286 = vld [vmem:[%s1283 + $0x10] sm:$0xff]
        %v1287 = vld [vmem:[%s1283 + $0x18] sm:$0xff]
        %1289 = vset.pattern.permute.xlu0 0
        %1290 = vperm.xlu0 %1289, %v1284
        %v1291 = vpop.permute.xlu0 %1290
        %1294 = vset.pattern.permute.xlu0 0
        %1295 = vperm.xlu0 %1294, %v1285
        %v1296 = vpop.permute.xlu0 %1295
        %1299 = vset.pattern.permute.xlu0 0
        %1300 = vperm.xlu0 %1299, %v1286
        %v1301 = vpop.permute.xlu0 %1300
        %1304 = vset.pattern.permute.xlu0 0
        %1305 = vperm.xlu0 %1304, %v1287
        %v1306 = vpop.permute.xlu0 %1305
        %v1312 = vunpack.c.l.b16 %v1278
        %v1313 = vunpack.c.l.b16 %v1279
        %v1314 = vunpack.c.l.b16 %v1280
        %v1315 = vunpack.c.l.b16 %v1281
        %v1316 = vpack.c.b16 %v1313, %v1312
        %v1317 = vpack.c.b16 %v1315, %v1314
        %v1319 = vsel %vm504, %v1316, 0
        %v1322 = vsel %vm504, %v1317, 0
        %1324 = vmatprep.subr.bf16.mxu0 0
        %1325 = vmatpush1.bf16.msra.mxu0 %v1282
        %1326 = vmatprep.subr.bf16.mxu0 0
        %1327 = vmatpush1.bf16.msra.mxu0 0
        %1328 = vmatprep.subr.bf16.mxu0 0
        %1329 = vmatpush1.bf16.msra.mxu0 0
        %1330 = vmatprep.subr.bf16.mxu0 0
        %1331 = vmatpush1.bf16.msra.mxu0 0
        %1332 = vmatprep.subr.bf16.mxu0 0
        %1333 = vmatpush1.bf16.msra.mxu0 0
        %1334 = vmatprep.subr.bf16.mxu0 0
        %1335 = vmatpush1.bf16.msra.mxu0 0
        %1336 = vmatprep.subr.bf16.mxu0 0
        %1337 = vmatpush1.bf16.msra.mxu0 0
        %1338 = vmatprep.subr.bf16.mxu0 0
        %1339 = vmatpush1.bf16.msra.mxu0 0
        %1340 = vmatprep.subr.bf16.mxu0 0
        %1341 = vmatpush1.bf16.msra.mxu0 0
        %1342 = vmatprep.subr.bf16.mxu0 0
        %1343 = vmatpush1.bf16.msra.mxu0 0
        %1344 = vmatprep.subr.bf16.mxu0 0
        %1345 = vmatpush1.bf16.msra.mxu0 0
        %1346 = vmatprep.subr.bf16.mxu0 0
        %1347 = vmatpush1.bf16.msra.mxu0 0
        %1348 = vmatprep.subr.bf16.mxu0 0
        %1349 = vmatpush1.bf16.msra.mxu0 0
        %1350 = vmatprep.subr.bf16.mxu0 0
        %1351 = vmatpush1.bf16.msra.mxu0 0
        %1352 = vmatprep.subr.bf16.mxu0 0
        %1353 = vmatpush1.bf16.msra.mxu0 0
        %1354 = vmatprep.subr.bf16.mxu0 0
        %1355 = vmatpush1.bf16.msra.mxu0 0
        %1356 = vmatprep.mubr.bf16.mxu0 0
        %1357 = vmatmul.mubr.bf16.gmra.mrb[0].mxu0 %v1319
        %v1358 = vpop.f32.mrb[0].mxu0
        %v1359 = vadd.f32 %v1291, %v1358
        %v1360 = vpop.f32.mrb[0].mxu0
        %v1361 = vpop.f32.mrb[0].mxu0
        %v1362 = vadd.f32 %v1296, %v1361
        %v1363 = vpop.f32.mrb[0].mxu0
        %1364 = vmatprep.mubr.bf16.mxu0 0
        %1365 = vmatmul.mubr.bf16.gmra.mrb[0].mxu0 %v1322
        %v1366 = vpop.f32.mrb[0].mxu0
        %v1367 = vadd.f32 %v1301, %v1366
        %v1368 = vpop.f32.mrb[0].mxu0
        %v1369 = vpop.f32.mrb[0].mxu0
        %v1370 = vadd.f32 %v1306, %v1369
        %v1371 = vpop.f32.mrb[0].mxu0
        %1372 = vdwg.mxu0
        %v1373 = vadd.f32 %v1066, %v1359
        %v1374 = vadd.f32 %v1067, %v1362
        %v1375 = vadd.f32 %v1068, %v1367
        %v1376 = vadd.f32 %v1069, %v1370
        %1377 = vrot.lane.b32.xlu0 %v1373, 16
        %v1378 = vpop.permute.xlu0 %1377
        %v1379 = vsel %vm458, %v1378, %v1373
        %1380 = vrot.lane.b32.xlu0 %v1374, 16
        %v1381 = vpop.permute.xlu0 %1380
        %v1382 = vsel %vm458, %v1381, %v1374
        %1383 = vrot.lane.b32.xlu0 %v1379, 16
        %v1384 = vpop.permute.xlu0 %1383
        %1385 = vrot.lane.b32.xlu0 %v1382, 16
        %v1386 = vpop.permute.xlu0 %1385
        %v1387 = vsel %vm458, %v1384, %v1373
        %v1388 = vsel %vm458, %v1386, %v1374
        %1391 = vrot.lane.b32.xlu0 %v1387, 113
        %v1392 = vpop.permute.xlu0 %1391
        %1393 = vrot.lane.b32.xlu0 %v1388, 113
        %v1394 = vpop.permute.xlu0 %1393
        %v1397 = vsel %vm472, %v1392, 0.0
        %v1398 = vsel %vm472, %v1394, 0.0
        %v1399 = vpack.c.bf16 %v1398, %v1397
        %s1400 = scalar_lea.vmem %s3, 96
        %v1401 = vld [vmem:[%s1400] sm:$0xf]
        %v1402 = vld [vmem:[%s1400 + $0x4] sm:$0xf]
        %v1403 = vld [vmem:[%s1400 + $0x8] sm:$0xf]
        %v1404 = vld [vmem:[%s1400 + $0xc] sm:$0xf]
        %v1405 = vpack.c.bf16 %v1374, %v1373
        %s1406 = scalar_lea.vmem %s3, 112
        %v1407 = vld [vmem:[%s1406] sm:$0xf]
        %v1408 = vld [vmem:[%s1406 + $0x4] sm:$0xf]
        %v1409 = vld [vmem:[%s1406 + $0x8] sm:$0xf]
        %v1410 = vld [vmem:[%s1406 + $0xc] sm:$0xf]
        %v1415 = vunpack.c.l.b16 %v1407
        %v1416 = vunpack.c.l.b16 %v1408
        %v1417 = vunpack.c.l.b16 %v1409
        %v1418 = vunpack.c.l.b16 %v1410
        %v1419 = vpack.c.b16 %v1416, %v1415
        %v1420 = vpack.c.b16 %v1418, %v1417
        %v1422 = vsel %vm504, %v1419, 0
        %v1425 = vsel %vm504, %v1420, 0
        %1427 = vmatprep.subr.bf16.mxu0 0
        %1428 = vmatpush1.bf16.msra.mxu0 %v1405
        %1429 = vmatprep.subr.bf16.mxu0 0
        %1430 = vmatpush1.bf16.msra.mxu0 0
        %1431 = vmatprep.subr.bf16.mxu0 0
        %1432 = vmatpush1.bf16.msra.mxu0 0
        %1433 = vmatprep.subr.bf16.mxu0 0
        %1434 = vmatpush1.bf16.msra.mxu0 0
        %1435 = vmatprep.subr.bf16.mxu0 0
        %1436 = vmatpush1.bf16.msra.mxu0 0
        %1437 = vmatprep.subr.bf16.mxu0 0
        %1438 = vmatpush1.bf16.msra.mxu0 0
        %1439 = vmatprep.subr.bf16.mxu0 0
        %1440 = vmatpush1.bf16.msra.mxu0 0
        %1441 = vmatprep.subr.bf16.mxu0 0
        %1442 = vmatpush1.bf16.msra.mxu0 0
        %1443 = vmatprep.subr.bf16.mxu0 0
        %1444 = vmatpush1.bf16.msra.mxu0 0
        %1445 = vmatprep.subr.bf16.mxu0 0
        %1446 = vmatpush1.bf16.msra.mxu0 0
        %1447 = vmatprep.subr.bf16.mxu0 0
        %1448 = vmatpush1.bf16.msra.mxu0 0
        %1449 = vmatprep.subr.bf16.mxu0 0
        %1450 = vmatpush1.bf16.msra.mxu0 0
        %1451 = vmatprep.subr.bf16.mxu0 0
        %1452 = vmatpush1.bf16.msra.mxu0 0
        %1453 = vmatprep.subr.bf16.mxu0 0
        %1454 = vmatpush1.bf16.msra.mxu0 0
        %1455 = vmatprep.subr.bf16.mxu0 0
        %1456 = vmatpush1.bf16.msra.mxu0 0
        %1457 = vmatprep.subr.bf16.mxu0 0
        %1458 = vmatpush1.bf16.msra.mxu0 0
        %1459 = vmatprep.mubr.bf16.mxu0 0
        %1460 = vmatmul.mubr.bf16.gmra.mrb[0].mxu0 %v1422
        %v1461 = vpop.f32.mrb[0].mxu0
        %v1462 = vadd.f32 0.0, %v1461
        %v1463 = vpop.f32.mrb[0].mxu0
        %v1464 = vpop.f32.mrb[0].mxu0
        %v1465 = vadd.f32 0.0, %v1464
        %v1466 = vpop.f32.mrb[0].mxu0
        %1467 = vmatprep.mubr.bf16.mxu0 0
        %1468 = vmatmul.mubr.bf16.gmra.mrb[0].mxu0 %v1425
        %v1469 = vpop.f32.mrb[0].mxu0
        %v1470 = vadd.f32 0.0, %v1469
        %v1471 = vpop.f32.mrb[0].mxu0
        %v1472 = vpop.f32.mrb[0].mxu0
        %v1473 = vadd.f32 0.0, %v1472
        %v1474 = vpop.f32.mrb[0].mxu0
        %1475 = vdwg.mxu0
        %v1480 = vunpack.c.l.b16 %v1401
        %v1481 = vunpack.c.l.b16 %v1402
        %v1482 = vunpack.c.l.b16 %v1403
        %v1483 = vunpack.c.l.b16 %v1404
        %v1484 = vpack.c.b16 %v1481, %v1480
        %v1485 = vpack.c.b16 %v1483, %v1482
        %v1487 = vsel %vm504, %v1484, 0
        %v1490 = vsel %vm504, %v1485, 0
        %1492 = vmatprep.subr.bf16.mxu0 0
        %1493 = vmatpush1.bf16.msra.mxu0 %v1399
        %1494 = vmatprep.subr.bf16.mxu0 0
        %1495 = vmatpush1.bf16.msra.mxu0 0
        %1496 = vmatprep.subr.bf16.mxu0 0
        %1497 = vmatpush1.bf16.msra.mxu0 0
        %1498 = vmatprep.subr.bf16.mxu0 0
        %1499 = vmatpush1.bf16.msra.mxu0 0
        %1500 = vmatprep.subr.bf16.mxu0 0
        %1501 = vmatpush1.bf16.msra.mxu0 0
        %1502 = vmatprep.subr.bf16.mxu0 0
        %1503 = vmatpush1.bf16.msra.mxu0 0
        %1504 = vmatprep.subr.bf16.mxu0 0
        %1505 = vmatpush1.bf16.msra.mxu0 0
        %1506 = vmatprep.subr.bf16.mxu0 0
        %1507 = vmatpush1.bf16.msra.mxu0 0
        %1508 = vmatprep.subr.bf16.mxu0 0
        %1509 = vmatpush1.bf16.msra.mxu0 0
        %1510 = vmatprep.subr.bf16.mxu0 0
        %1511 = vmatpush1.bf16.msra.mxu0 0
        %1512 = vmatprep.subr.bf16.mxu0 0
        %1513 = vmatpush1.bf16.msra.mxu0 0
        %1514 = vmatprep.subr.bf16.mxu0 0
        %1515 = vmatpush1.bf16.msra.mxu0 0
        %1516 = vmatprep.subr.bf16.mxu0 0
        %1517 = vmatpush1.bf16.msra.mxu0 0
        %1518 = vmatprep.subr.bf16.mxu0 0
        %1519 = vmatpush1.bf16.msra.mxu0 0
        %1520 = vmatprep.subr.bf16.mxu0 0
        %1521 = vmatpush1.bf16.msra.mxu0 0
        %1522 = vmatprep.subr.bf16.mxu0 0
        %1523 = vmatpush1.bf16.msra.mxu0 0
        %1524 = vmatprep.mubr.bf16.mxu0 0
        %1525 = vmatmul.mubr.bf16.gmra.mrb[0].mxu0 %v1487
        %v1526 = vpop.f32.mrb[0].mxu0
        %v1527 = vadd.f32 %v1462, %v1526
        %v1528 = vpop.f32.mrb[0].mxu0
        %v1529 = vpop.f32.mrb[0].mxu0
        %v1530 = vadd.f32 %v1465, %v1529
        %v1531 = vpop.f32.mrb[0].mxu0
        %1532 = vmatprep.mubr.bf16.mxu0 0
        %1533 = vmatmul.mubr.bf16.gmra.mrb[0].mxu0 %v1490
        %v1534 = vpop.f32.mrb[0].mxu0
        %v1535 = vadd.f32 %v1470, %v1534
        %v1536 = vpop.f32.mrb[0].mxu0
        %v1537 = vpop.f32.mrb[0].mxu0
        %v1538 = vadd.f32 %v1473, %v1537
        %v1539 = vpop.f32.mrb[0].mxu0
        %1540 = vdwg.mxu0
        %s1541 = scalar_lea.vmem %s4, 96
        %v1542 = vld [vmem:[%s1541] sm:$0xff]
        %v1543 = vld [vmem:[%s1541 + $0x8] sm:$0xff]
        %v1544 = vld [vmem:[%s1541 + $0x10] sm:$0xff]
        %v1545 = vld [vmem:[%s1541 + $0x18] sm:$0xff]
        %1547 = vset.pattern.permute.xlu0 0
        %1548 = vperm.xlu0 %1547, %v1542
        %v1549 = vpop.permute.xlu0 %1548
        %1552 = vset.pattern.permute.xlu0 0
        %1553 = vperm.xlu0 %1552, %v1543
        %v1554 = vpop.permute.xlu0 %1553
        %1557 = vset.pattern.permute.xlu0 0
        %1558 = vperm.xlu0 %1557, %v1544
        %v1559 = vpop.permute.xlu0 %1558
        %1562 = vset.pattern.permute.xlu0 0
        %1563 = vperm.xlu0 %1562, %v1545
        %v1564 = vpop.permute.xlu0 %1563
        %v1566 = vadd.f32 %v1527, %v1549
        %v1567 = vadd.f32 %v1530, %v1554
        %v1568 = vadd.f32 %v1535, %v1559
        %v1569 = vadd.f32 %v1538, %v1564
        %v1570 = vtanh.pop %v1566
        %v1571 = vtanh.pop %v1567
        %v1572 = vmul.f32 %v1568, 0.5
        %v1573 = vmul.f32 %v1569, 0.5
        %v1574 = vtanh.pop %v1572
        %v1575 = vtanh.pop %v1573
        %v1576 = vadd.f32 %v1574, 1.0
        %v1577 = vadd.f32 %v1575, 1.0
        %v1578 = vmul.f32 %v1576, 0.5
        %v1579 = vmul.f32 %v1577, 0.5
        %v1580 = vmul.f32 %v1570, %v1578
        %v1581 = vmul.f32 %v1571, %v1579
        %s1582 = scalar_lea.vmem %s5, 48
        %v1583 = vld [vmem:[%s1582] sm:$0xf]
        %v1584 = vld [vmem:[%s1582 + $0x4] sm:$0xf]
        %v1585 = vld [vmem:[%s1582 + $0x8] sm:$0xf]
        %v1586 = vld [vmem:[%s1582 + $0xc] sm:$0xf]
        %v1587 = vpack.c.bf16 %v1581, %v1580
        %s1588 = scalar_lea.vmem %s6, 96
        %v1589 = vld [vmem:[%s1588] sm:$0xff]
        %v1590 = vld [vmem:[%s1588 + $0x8] sm:$0xff]
        %v1591 = vld [vmem:[%s1588 + $0x10] sm:$0xff]
        %v1592 = vld [vmem:[%s1588 + $0x18] sm:$0xff]
        %1594 = vset.pattern.permute.xlu0 0
        %1595 = vperm.xlu0 %1594, %v1589
        %v1596 = vpop.permute.xlu0 %1595
        %1599 = vset.pattern.permute.xlu0 0
        %1600 = vperm.xlu0 %1599, %v1590
        %v1601 = vpop.permute.xlu0 %1600
        %1604 = vset.pattern.permute.xlu0 0
        %1605 = vperm.xlu0 %1604, %v1591
        %v1606 = vpop.permute.xlu0 %1605
        %1609 = vset.pattern.permute.xlu0 0
        %1610 = vperm.xlu0 %1609, %v1592
        %v1611 = vpop.permute.xlu0 %1610
        %v1617 = vunpack.c.l.b16 %v1583
        %v1618 = vunpack.c.l.b16 %v1584
        %v1619 = vunpack.c.l.b16 %v1585
        %v1620 = vunpack.c.l.b16 %v1586
        %v1621 = vpack.c.b16 %v1618, %v1617
        %v1622 = vpack.c.b16 %v1620, %v1619
        %v1624 = vsel %vm504, %v1621, 0
        %v1627 = vsel %vm504, %v1622, 0
        %1629 = vmatprep.subr.bf16.mxu0 0
        %1630 = vmatpush1.bf16.msra.mxu0 %v1587
        %1631 = vmatprep.subr.bf16.mxu0 0
        %1632 = vmatpush1.bf16.msra.mxu0 0
        %1633 = vmatprep.subr.bf16.mxu0 0
        %1634 = vmatpush1.bf16.msra.mxu0 0
        %1635 = vmatprep.subr.bf16.mxu0 0
        %1636 = vmatpush1.bf16.msra.mxu0 0
        %1637 = vmatprep.subr.bf16.mxu0 0
        %1638 = vmatpush1.bf16.msra.mxu0 0
        %1639 = vmatprep.subr.bf16.mxu0 0
        %1640 = vmatpush1.bf16.msra.mxu0 0
        %1641 = vmatprep.subr.bf16.mxu0 0
        %1642 = vmatpush1.bf16.msra.mxu0 0
        %1643 = vmatprep.subr.bf16.mxu0 0
        %1644 = vmatpush1.bf16.msra.mxu0 0
        %1645 = vmatprep.subr.bf16.mxu0 0
        %1646 = vmatpush1.bf16.msra.mxu0 0
        %1647 = vmatprep.subr.bf16.mxu0 0
        %1648 = vmatpush1.bf16.msra.mxu0 0
        %1649 = vmatprep.subr.bf16.mxu0 0
        %1650 = vmatpush1.bf16.msra.mxu0 0
        %1651 = vmatprep.subr.bf16.mxu0 0
        %1652 = vmatpush1.bf16.msra.mxu0 0
        %1653 = vmatprep.subr.bf16.mxu0 0
        %1654 = vmatpush1.bf16.msra.mxu0 0
        %1655 = vmatprep.subr.bf16.mxu0 0
        %1656 = vmatpush1.bf16.msra.mxu0 0
        %1657 = vmatprep.subr.bf16.mxu0 0
        %1658 = vmatpush1.bf16.msra.mxu0 0
        %1659 = vmatprep.subr.bf16.mxu0 0
        %1660 = vmatpush1.bf16.msra.mxu0 0
        %1661 = vmatprep.mubr.bf16.mxu0 0
        %1662 = vmatmul.mubr.bf16.gmra.mrb[0].mxu0 %v1624
        %v1663 = vpop.f32.mrb[0].mxu0
        %v1664 = vadd.f32 %v1596, %v1663
        %v1665 = vpop.f32.mrb[0].mxu0
        %v1666 = vpop.f32.mrb[0].mxu0
        %v1667 = vadd.f32 %v1601, %v1666
        %v1668 = vpop.f32.mrb[0].mxu0
        %1669 = vmatprep.mubr.bf16.mxu0 0
        %1670 = vmatmul.mubr.bf16.gmra.mrb[0].mxu0 %v1627
        %v1671 = vpop.f32.mrb[0].mxu0
        %v1672 = vadd.f32 %v1606, %v1671
        %v1673 = vpop.f32.mrb[0].mxu0
        %v1674 = vpop.f32.mrb[0].mxu0
        %v1675 = vadd.f32 %v1611, %v1674
        %v1676 = vpop.f32.mrb[0].mxu0
        %1677 = vdwg.mxu0
        %v1678 = vadd.f32 %v1373, %v1664
        %v1679 = vadd.f32 %v1374, %v1667
        %v1680 = vadd.f32 %v1375, %v1672
        %v1681 = vadd.f32 %v1376, %v1675
        %1682 = vrot.lane.b32.xlu0 %v1678, 16
        %v1683 = vpop.permute.xlu0 %1682
        %v1684 = vsel %vm458, %v1683, %v1678
        %1685 = vrot.lane.b32.xlu0 %v1679, 16
        %v1686 = vpop.permute.xlu0 %1685
        %v1687 = vsel %vm458, %v1686, %v1679
        %1688 = vrot.lane.b32.xlu0 %v1684, 16
        %v1689 = vpop.permute.xlu0 %1688
        %1690 = vrot.lane.b32.xlu0 %v1687, 16
        %v1691 = vpop.permute.xlu0 %1690
        %v1692 = vsel %vm458, %v1689, %v1678
        %v1693 = vsel %vm458, %v1691, %v1679
        %1696 = vrot.lane.b32.xlu0 %v1692, 114
        %v1697 = vpop.permute.xlu0 %1696
        %1698 = vrot.lane.b32.xlu0 %v1693, 114
        %v1699 = vpop.permute.xlu0 %1698
        %v1702 = vsel %vm776, %v1697, 0.0
        %v1703 = vsel %vm776, %v1699, 0.0
        %v1704 = vpack.c.bf16 %v1703, %v1702
        %s1705 = scalar_lea.vmem %s3, 128
        %v1706 = vld [vmem:[%s1705] sm:$0xf]
        %v1707 = vld [vmem:[%s1705 + $0x4] sm:$0xf]
        %v1708 = vld [vmem:[%s1705 + $0x8] sm:$0xf]
        %v1709 = vld [vmem:[%s1705 + $0xc] sm:$0xf]
        %v1710 = vpack.c.bf16 %v1679, %v1678
        %s1711 = scalar_lea.vmem %s3, 144
        %v1712 = vld [vmem:[%s1711] sm:$0xf]
        %v1713 = vld [vmem:[%s1711 + $0x4] sm:$0xf]
        %v1714 = vld [vmem:[%s1711 + $0x8] sm:$0xf]
        %v1715 = vld [vmem:[%s1711 + $0xc] sm:$0xf]
        %v1720 = vunpack.c.l.b16 %v1712
        %v1721 = vunpack.c.l.b16 %v1713
        %v1722 = vunpack.c.l.b16 %v1714
        %v1723 = vunpack.c.l.b16 %v1715
        %v1724 = vpack.c.b16 %v1721, %v1720
        %v1725 = vpack.c.b16 %v1723, %v1722
        %v1727 = vsel %vm504, %v1724, 0
        %v1730 = vsel %vm504, %v1725, 0
        %1732 = vmatprep.subr.bf16.mxu0 0
        %1733 = vmatpush1.bf16.msra.mxu0 %v1710
        %1734 = vmatprep.subr.bf16.mxu0 0
        %1735 = vmatpush1.bf16.msra.mxu0 0
        %1736 = vmatprep.subr.bf16.mxu0 0
        %1737 = vmatpush1.bf16.msra.mxu0 0
        %1738 = vmatprep.subr.bf16.mxu0 0
        %1739 = vmatpush1.bf16.msra.mxu0 0
        %1740 = vmatprep.subr.bf16.mxu0 0
        %1741 = vmatpush1.bf16.msra.mxu0 0
        %1742 = vmatprep.subr.bf16.mxu0 0
        %1743 = vmatpush1.bf16.msra.mxu0 0
        %1744 = vmatprep.subr.bf16.mxu0 0
        %1745 = vmatpush1.bf16.msra.mxu0 0
        %1746 = vmatprep.subr.bf16.mxu0 0
        %1747 = vmatpush1.bf16.msra.mxu0 0
        %1748 = vmatprep.subr.bf16.mxu0 0
        %1749 = vmatpush1.bf16.msra.mxu0 0
        %1750 = vmatprep.subr.bf16.mxu0 0
        %1751 = vmatpush1.bf16.msra.mxu0 0
        %1752 = vmatprep.subr.bf16.mxu0 0
        %1753 = vmatpush1.bf16.msra.mxu0 0
        %1754 = vmatprep.subr.bf16.mxu0 0
        %1755 = vmatpush1.bf16.msra.mxu0 0
        %1756 = vmatprep.subr.bf16.mxu0 0
        %1757 = vmatpush1.bf16.msra.mxu0 0
        %1758 = vmatprep.subr.bf16.mxu0 0
        %1759 = vmatpush1.bf16.msra.mxu0 0
        %1760 = vmatprep.subr.bf16.mxu0 0
        %1761 = vmatpush1.bf16.msra.mxu0 0
        %1762 = vmatprep.subr.bf16.mxu0 0
        %1763 = vmatpush1.bf16.msra.mxu0 0
        %1764 = vmatprep.mubr.bf16.mxu0 0
        %1765 = vmatmul.mubr.bf16.gmra.mrb[0].mxu0 %v1727
        %v1766 = vpop.f32.mrb[0].mxu0
        %v1767 = vadd.f32 0.0, %v1766
        %v1768 = vpop.f32.mrb[0].mxu0
        %v1769 = vpop.f32.mrb[0].mxu0
        %v1770 = vadd.f32 0.0, %v1769
        %v1771 = vpop.f32.mrb[0].mxu0
        %1772 = vmatprep.mubr.bf16.mxu0 0
        %1773 = vmatmul.mubr.bf16.gmra.mrb[0].mxu0 %v1730
        %v1774 = vpop.f32.mrb[0].mxu0
        %v1775 = vadd.f32 0.0, %v1774
        %v1776 = vpop.f32.mrb[0].mxu0
        %v1777 = vpop.f32.mrb[0].mxu0
        %v1778 = vadd.f32 0.0, %v1777
        %v1779 = vpop.f32.mrb[0].mxu0
        %1780 = vdwg.mxu0
        %v1785 = vunpack.c.l.b16 %v1706
        %v1786 = vunpack.c.l.b16 %v1707
        %v1787 = vunpack.c.l.b16 %v1708
        %v1788 = vunpack.c.l.b16 %v1709
        %v1789 = vpack.c.b16 %v1786, %v1785
        %v1790 = vpack.c.b16 %v1788, %v1787
        %v1792 = vsel %vm504, %v1789, 0
        %v1795 = vsel %vm504, %v1790, 0
        %1797 = vmatprep.subr.bf16.mxu0 0
        %1798 = vmatpush1.bf16.msra.mxu0 %v1704
        %1799 = vmatprep.subr.bf16.mxu0 0
        %1800 = vmatpush1.bf16.msra.mxu0 0
        %1801 = vmatprep.subr.bf16.mxu0 0
        %1802 = vmatpush1.bf16.msra.mxu0 0
        %1803 = vmatprep.subr.bf16.mxu0 0
        %1804 = vmatpush1.bf16.msra.mxu0 0
        %1805 = vmatprep.subr.bf16.mxu0 0
        %1806 = vmatpush1.bf16.msra.mxu0 0
        %1807 = vmatprep.subr.bf16.mxu0 0
        %1808 = vmatpush1.bf16.msra.mxu0 0
        %1809 = vmatprep.subr.bf16.mxu0 0
        %1810 = vmatpush1.bf16.msra.mxu0 0
        %1811 = vmatprep.subr.bf16.mxu0 0
        %1812 = vmatpush1.bf16.msra.mxu0 0
        %1813 = vmatprep.subr.bf16.mxu0 0
        %1814 = vmatpush1.bf16.msra.mxu0 0
        %1815 = vmatprep.subr.bf16.mxu0 0
        %1816 = vmatpush1.bf16.msra.mxu0 0
        %1817 = vmatprep.subr.bf16.mxu0 0
        %1818 = vmatpush1.bf16.msra.mxu0 0
        %1819 = vmatprep.subr.bf16.mxu0 0
        %1820 = vmatpush1.bf16.msra.mxu0 0
        %1821 = vmatprep.subr.bf16.mxu0 0
        %1822 = vmatpush1.bf16.msra.mxu0 0
        %1823 = vmatprep.subr.bf16.mxu0 0
        %1824 = vmatpush1.bf16.msra.mxu0 0
        %1825 = vmatprep.subr.bf16.mxu0 0
        %1826 = vmatpush1.bf16.msra.mxu0 0
        %1827 = vmatprep.subr.bf16.mxu0 0
        %1828 = vmatpush1.bf16.msra.mxu0 0
        %1829 = vmatprep.mubr.bf16.mxu0 0
        %1830 = vmatmul.mubr.bf16.gmra.mrb[0].mxu0 %v1792
        %v1831 = vpop.f32.mrb[0].mxu0
        %v1832 = vadd.f32 %v1767, %v1831
        %v1833 = vpop.f32.mrb[0].mxu0
        %v1834 = vpop.f32.mrb[0].mxu0
        %v1835 = vadd.f32 %v1770, %v1834
        %v1836 = vpop.f32.mrb[0].mxu0
        %1837 = vmatprep.mubr.bf16.mxu0 0
        %1838 = vmatmul.mubr.bf16.gmra.mrb[0].mxu0 %v1795
        %v1839 = vpop.f32.mrb[0].mxu0
        %v1840 = vadd.f32 %v1775, %v1839
        %v1841 = vpop.f32.mrb[0].mxu0
        %v1842 = vpop.f32.mrb[0].mxu0
        %v1843 = vadd.f32 %v1778, %v1842
        %v1844 = vpop.f32.mrb[0].mxu0
        %1845 = vdwg.mxu0
        %s1846 = scalar_lea.vmem %s4, 128
        %v1847 = vld [vmem:[%s1846] sm:$0xff]
        %v1848 = vld [vmem:[%s1846 + $0x8] sm:$0xff]
        %v1849 = vld [vmem:[%s1846 + $0x10] sm:$0xff]
        %v1850 = vld [vmem:[%s1846 + $0x18] sm:$0xff]
        %1852 = vset.pattern.permute.xlu0 0
        %1853 = vperm.xlu0 %1852, %v1847
        %v1854 = vpop.permute.xlu0 %1853
        %1857 = vset.pattern.permute.xlu0 0
        %1858 = vperm.xlu0 %1857, %v1848
        %v1859 = vpop.permute.xlu0 %1858
        %1862 = vset.pattern.permute.xlu0 0
        %1863 = vperm.xlu0 %1862, %v1849
        %v1864 = vpop.permute.xlu0 %1863
        %1867 = vset.pattern.permute.xlu0 0
        %1868 = vperm.xlu0 %1867, %v1850
        %v1869 = vpop.permute.xlu0 %1868
        %v1871 = vadd.f32 %v1832, %v1854
        %v1872 = vadd.f32 %v1835, %v1859
        %v1873 = vadd.f32 %v1840, %v1864
        %v1874 = vadd.f32 %v1843, %v1869
        %v1875 = vtanh.pop %v1871
        %v1876 = vtanh.pop %v1872
        %v1877 = vmul.f32 %v1873, 0.5
        %v1878 = vmul.f32 %v1874, 0.5
        %v1879 = vtanh.pop %v1877
        %v1880 = vtanh.pop %v1878
        %v1881 = vadd.f32 %v1879, 1.0
        %v1882 = vadd.f32 %v1880, 1.0
        %v1883 = vmul.f32 %v1881, 0.5
        %v1884 = vmul.f32 %v1882, 0.5
        %v1885 = vmul.f32 %v1875, %v1883
        %v1886 = vmul.f32 %v1876, %v1884
        %s1887 = scalar_lea.vmem %s5, 64
        %v1888 = vld [vmem:[%s1887] sm:$0xf]
        %v1889 = vld [vmem:[%s1887 + $0x4] sm:$0xf]
        %v1890 = vld [vmem:[%s1887 + $0x8] sm:$0xf]
        %v1891 = vld [vmem:[%s1887 + $0xc] sm:$0xf]
        %v1892 = vpack.c.bf16 %v1886, %v1885
        %s1893 = scalar_lea.vmem %s6, 128
        %v1894 = vld [vmem:[%s1893] sm:$0xff]
        %v1895 = vld [vmem:[%s1893 + $0x8] sm:$0xff]
        %v1896 = vld [vmem:[%s1893 + $0x10] sm:$0xff]
        %v1897 = vld [vmem:[%s1893 + $0x18] sm:$0xff]
        %1899 = vset.pattern.permute.xlu0 0
        %1900 = vperm.xlu0 %1899, %v1894
        %v1901 = vpop.permute.xlu0 %1900
        %1904 = vset.pattern.permute.xlu0 0
        %1905 = vperm.xlu0 %1904, %v1895
        %v1906 = vpop.permute.xlu0 %1905
        %1909 = vset.pattern.permute.xlu0 0
        %1910 = vperm.xlu0 %1909, %v1896
        %v1911 = vpop.permute.xlu0 %1910
        %1914 = vset.pattern.permute.xlu0 0
        %1915 = vperm.xlu0 %1914, %v1897
        %v1916 = vpop.permute.xlu0 %1915
        %v1922 = vunpack.c.l.b16 %v1888
        %v1923 = vunpack.c.l.b16 %v1889
        %v1924 = vunpack.c.l.b16 %v1890
        %v1925 = vunpack.c.l.b16 %v1891
        %v1926 = vpack.c.b16 %v1923, %v1922
        %v1927 = vpack.c.b16 %v1925, %v1924
        %v1929 = vsel %vm504, %v1926, 0
        %v1932 = vsel %vm504, %v1927, 0
        %1934 = vmatprep.subr.bf16.mxu0 0
        %1935 = vmatpush1.bf16.msra.mxu0 %v1892
        %1936 = vmatprep.subr.bf16.mxu0 0
        %1937 = vmatpush1.bf16.msra.mxu0 0
        %1938 = vmatprep.subr.bf16.mxu0 0
        %1939 = vmatpush1.bf16.msra.mxu0 0
        %1940 = vmatprep.subr.bf16.mxu0 0
        %1941 = vmatpush1.bf16.msra.mxu0 0
        %1942 = vmatprep.subr.bf16.mxu0 0
        %1943 = vmatpush1.bf16.msra.mxu0 0
        %1944 = vmatprep.subr.bf16.mxu0 0
        %1945 = vmatpush1.bf16.msra.mxu0 0
        %1946 = vmatprep.subr.bf16.mxu0 0
        %1947 = vmatpush1.bf16.msra.mxu0 0
        %1948 = vmatprep.subr.bf16.mxu0 0
        %1949 = vmatpush1.bf16.msra.mxu0 0
        %1950 = vmatprep.subr.bf16.mxu0 0
        %1951 = vmatpush1.bf16.msra.mxu0 0
        %1952 = vmatprep.subr.bf16.mxu0 0
        %1953 = vmatpush1.bf16.msra.mxu0 0
        %1954 = vmatprep.subr.bf16.mxu0 0
        %1955 = vmatpush1.bf16.msra.mxu0 0
        %1956 = vmatprep.subr.bf16.mxu0 0
        %1957 = vmatpush1.bf16.msra.mxu0 0
        %1958 = vmatprep.subr.bf16.mxu0 0
        %1959 = vmatpush1.bf16.msra.mxu0 0
        %1960 = vmatprep.subr.bf16.mxu0 0
        %1961 = vmatpush1.bf16.msra.mxu0 0
        %1962 = vmatprep.subr.bf16.mxu0 0
        %1963 = vmatpush1.bf16.msra.mxu0 0
        %1964 = vmatprep.subr.bf16.mxu0 0
        %1965 = vmatpush1.bf16.msra.mxu0 0
        %1966 = vmatprep.mubr.bf16.mxu0 0
        %1967 = vmatmul.mubr.bf16.gmra.mrb[0].mxu0 %v1929
        %v1968 = vpop.f32.mrb[0].mxu0
        %v1969 = vadd.f32 %v1901, %v1968
        %v1970 = vpop.f32.mrb[0].mxu0
        %v1971 = vpop.f32.mrb[0].mxu0
        %v1972 = vadd.f32 %v1906, %v1971
        %v1973 = vpop.f32.mrb[0].mxu0
        %1974 = vmatprep.mubr.bf16.mxu0 0
        %1975 = vmatmul.mubr.bf16.gmra.mrb[0].mxu0 %v1932
        %v1976 = vpop.f32.mrb[0].mxu0
        %v1977 = vadd.f32 %v1911, %v1976
        %v1978 = vpop.f32.mrb[0].mxu0
        %v1979 = vpop.f32.mrb[0].mxu0
        %v1980 = vadd.f32 %v1916, %v1979
        %v1981 = vpop.f32.mrb[0].mxu0
        %1982 = vdwg.mxu0
        %v1983 = vadd.f32 %v1678, %v1969
        %v1984 = vadd.f32 %v1679, %v1972
        %v1985 = vadd.f32 %v1680, %v1977
        %v1986 = vadd.f32 %v1681, %v1980
        %1987 = vrot.lane.b32.xlu0 %v1983, 16
        %v1988 = vpop.permute.xlu0 %1987
        %v1989 = vsel %vm458, %v1988, %v1983
        %1990 = vrot.lane.b32.xlu0 %v1984, 16
        %v1991 = vpop.permute.xlu0 %1990
        %v1992 = vsel %vm458, %v1991, %v1984
        %1993 = vrot.lane.b32.xlu0 %v1989, 16
        %v1994 = vpop.permute.xlu0 %1993
        %1995 = vrot.lane.b32.xlu0 %v1992, 16
        %v1996 = vpop.permute.xlu0 %1995
        %v1997 = vsel %vm458, %v1994, %v1983
        %v1998 = vsel %vm458, %v1996, %v1984
        %2001 = vrot.lane.b32.xlu0 %v1997, 116
        %v2002 = vpop.permute.xlu0 %2001
        %2003 = vrot.lane.b32.xlu0 %v1998, 116
        %v2004 = vpop.permute.xlu0 %2003
        %v2007 = vsel %vm1083, %v2002, 0.0
        %v2008 = vsel %vm1083, %v2004, 0.0
        %v2009 = vpack.c.bf16 %v2008, %v2007
        %s2010 = scalar_lea.vmem %s3, 160
        %v2011 = vld [vmem:[%s2010] sm:$0xf]
        %v2012 = vld [vmem:[%s2010 + $0x4] sm:$0xf]
        %v2013 = vld [vmem:[%s2010 + $0x8] sm:$0xf]
        %v2014 = vld [vmem:[%s2010 + $0xc] sm:$0xf]
        %v2015 = vpack.c.bf16 %v1984, %v1983
        %s2016 = scalar_lea.vmem %s3, 176
        %v2017 = vld [vmem:[%s2016] sm:$0xf]
        %v2018 = vld [vmem:[%s2016 + $0x4] sm:$0xf]
        %v2019 = vld [vmem:[%s2016 + $0x8] sm:$0xf]
        %v2020 = vld [vmem:[%s2016 + $0xc] sm:$0xf]
        %v2025 = vunpack.c.l.b16 %v2017
        %v2026 = vunpack.c.l.b16 %v2018
        %v2027 = vunpack.c.l.b16 %v2019
        %v2028 = vunpack.c.l.b16 %v2020
        %v2029 = vpack.c.b16 %v2026, %v2025
        %v2030 = vpack.c.b16 %v2028, %v2027
        %v2032 = vsel %vm504, %v2029, 0
        %v2035 = vsel %vm504, %v2030, 0
        %2037 = vmatprep.subr.bf16.mxu0 0
        %2038 = vmatpush1.bf16.msra.mxu0 %v2015
        %2039 = vmatprep.subr.bf16.mxu0 0
        %2040 = vmatpush1.bf16.msra.mxu0 0
        %2041 = vmatprep.subr.bf16.mxu0 0
        %2042 = vmatpush1.bf16.msra.mxu0 0
        %2043 = vmatprep.subr.bf16.mxu0 0
        %2044 = vmatpush1.bf16.msra.mxu0 0
        %2045 = vmatprep.subr.bf16.mxu0 0
        %2046 = vmatpush1.bf16.msra.mxu0 0
        %2047 = vmatprep.subr.bf16.mxu0 0
        %2048 = vmatpush1.bf16.msra.mxu0 0
        %2049 = vmatprep.subr.bf16.mxu0 0
        %2050 = vmatpush1.bf16.msra.mxu0 0
        %2051 = vmatprep.subr.bf16.mxu0 0
        %2052 = vmatpush1.bf16.msra.mxu0 0
        %2053 = vmatprep.subr.bf16.mxu0 0
        %2054 = vmatpush1.bf16.msra.mxu0 0
        %2055 = vmatprep.subr.bf16.mxu0 0
        %2056 = vmatpush1.bf16.msra.mxu0 0
        %2057 = vmatprep.subr.bf16.mxu0 0
        %2058 = vmatpush1.bf16.msra.mxu0 0
        %2059 = vmatprep.subr.bf16.mxu0 0
        %2060 = vmatpush1.bf16.msra.mxu0 0
        %2061 = vmatprep.subr.bf16.mxu0 0
        %2062 = vmatpush1.bf16.msra.mxu0 0
        %2063 = vmatprep.subr.bf16.mxu0 0
        %2064 = vmatpush1.bf16.msra.mxu0 0
        %2065 = vmatprep.subr.bf16.mxu0 0
        %2066 = vmatpush1.bf16.msra.mxu0 0
        %2067 = vmatprep.subr.bf16.mxu0 0
        %2068 = vmatpush1.bf16.msra.mxu0 0
        %2069 = vmatprep.mubr.bf16.mxu0 0
        %2070 = vmatmul.mubr.bf16.gmra.mrb[0].mxu0 %v2032
        %v2071 = vpop.f32.mrb[0].mxu0
        %v2072 = vadd.f32 0.0, %v2071
        %v2073 = vpop.f32.mrb[0].mxu0
        %v2074 = vpop.f32.mrb[0].mxu0
        %v2075 = vadd.f32 0.0, %v2074
        %v2076 = vpop.f32.mrb[0].mxu0
        %2077 = vmatprep.mubr.bf16.mxu0 0
        %2078 = vmatmul.mubr.bf16.gmra.mrb[0].mxu0 %v2035
        %v2079 = vpop.f32.mrb[0].mxu0
        %v2080 = vadd.f32 0.0, %v2079
        %v2081 = vpop.f32.mrb[0].mxu0
        %v2082 = vpop.f32.mrb[0].mxu0
        %v2083 = vadd.f32 0.0, %v2082
        %v2084 = vpop.f32.mrb[0].mxu0
        %2085 = vdwg.mxu0
        %v2090 = vunpack.c.l.b16 %v2011
        %v2091 = vunpack.c.l.b16 %v2012
        %v2092 = vunpack.c.l.b16 %v2013
        %v2093 = vunpack.c.l.b16 %v2014
        %v2094 = vpack.c.b16 %v2091, %v2090
        %v2095 = vpack.c.b16 %v2093, %v2092
        %v2097 = vsel %vm504, %v2094, 0
        %v2100 = vsel %vm504, %v2095, 0
        %2102 = vmatprep.subr.bf16.mxu0 0
        %2103 = vmatpush1.bf16.msra.mxu0 %v2009
        %2104 = vmatprep.subr.bf16.mxu0 0
        %2105 = vmatpush1.bf16.msra.mxu0 0
        %2106 = vmatprep.subr.bf16.mxu0 0
        %2107 = vmatpush1.bf16.msra.mxu0 0
        %2108 = vmatprep.subr.bf16.mxu0 0
        %2109 = vmatpush1.bf16.msra.mxu0 0
        %2110 = vmatprep.subr.bf16.mxu0 0
        %2111 = vmatpush1.bf16.msra.mxu0 0
        %2112 = vmatprep.subr.bf16.mxu0 0
        %2113 = vmatpush1.bf16.msra.mxu0 0
        %2114 = vmatprep.subr.bf16.mxu0 0
        %2115 = vmatpush1.bf16.msra.mxu0 0
        %2116 = vmatprep.subr.bf16.mxu0 0
        %2117 = vmatpush1.bf16.msra.mxu0 0
        %2118 = vmatprep.subr.bf16.mxu0 0
        %2119 = vmatpush1.bf16.msra.mxu0 0
        %2120 = vmatprep.subr.bf16.mxu0 0
        %2121 = vmatpush1.bf16.msra.mxu0 0
        %2122 = vmatprep.subr.bf16.mxu0 0
        %2123 = vmatpush1.bf16.msra.mxu0 0
        %2124 = vmatprep.subr.bf16.mxu0 0
        %2125 = vmatpush1.bf16.msra.mxu0 0
        %2126 = vmatprep.subr.bf16.mxu0 0
        %2127 = vmatpush1.bf16.msra.mxu0 0
        %2128 = vmatprep.subr.bf16.mxu0 0
        %2129 = vmatpush1.bf16.msra.mxu0 0
        %2130 = vmatprep.subr.bf16.mxu0 0
        %2131 = vmatpush1.bf16.msra.mxu0 0
        %2132 = vmatprep.subr.bf16.mxu0 0
        %2133 = vmatpush1.bf16.msra.mxu0 0
        %2134 = vmatprep.mubr.bf16.mxu0 0
        %2135 = vmatmul.mubr.bf16.gmra.mrb[0].mxu0 %v2097
        %v2136 = vpop.f32.mrb[0].mxu0
        %v2137 = vadd.f32 %v2072, %v2136
        %v2138 = vpop.f32.mrb[0].mxu0
        %v2139 = vpop.f32.mrb[0].mxu0
        %v2140 = vadd.f32 %v2075, %v2139
        %v2141 = vpop.f32.mrb[0].mxu0
        %2142 = vmatprep.mubr.bf16.mxu0 0
        %2143 = vmatmul.mubr.bf16.gmra.mrb[0].mxu0 %v2100
        %v2144 = vpop.f32.mrb[0].mxu0
        %v2145 = vadd.f32 %v2080, %v2144
        %v2146 = vpop.f32.mrb[0].mxu0
        %v2147 = vpop.f32.mrb[0].mxu0
        %v2148 = vadd.f32 %v2083, %v2147
        %v2149 = vpop.f32.mrb[0].mxu0
        %2150 = vdwg.mxu0
        %s2151 = scalar_lea.vmem %s4, 160
        %v2152 = vld [vmem:[%s2151] sm:$0xff]
        %v2153 = vld [vmem:[%s2151 + $0x8] sm:$0xff]
        %v2154 = vld [vmem:[%s2151 + $0x10] sm:$0xff]
        %v2155 = vld [vmem:[%s2151 + $0x18] sm:$0xff]
        %2157 = vset.pattern.permute.xlu0 0
        %2158 = vperm.xlu0 %2157, %v2152
        %v2159 = vpop.permute.xlu0 %2158
        %2162 = vset.pattern.permute.xlu0 0
        %2163 = vperm.xlu0 %2162, %v2153
        %v2164 = vpop.permute.xlu0 %2163
        %2167 = vset.pattern.permute.xlu0 0
        %2168 = vperm.xlu0 %2167, %v2154
        %v2169 = vpop.permute.xlu0 %2168
        %2172 = vset.pattern.permute.xlu0 0
        %2173 = vperm.xlu0 %2172, %v2155
        %v2174 = vpop.permute.xlu0 %2173
        %v2176 = vadd.f32 %v2137, %v2159
        %v2177 = vadd.f32 %v2140, %v2164
        %v2178 = vadd.f32 %v2145, %v2169
        %v2179 = vadd.f32 %v2148, %v2174
        %v2180 = vtanh.pop %v2176
        %v2181 = vtanh.pop %v2177
        %v2182 = vmul.f32 %v2178, 0.5
        %v2183 = vmul.f32 %v2179, 0.5
        %v2184 = vtanh.pop %v2182
        %v2185 = vtanh.pop %v2183
        %v2186 = vadd.f32 %v2184, 1.0
        %v2187 = vadd.f32 %v2185, 1.0
        %v2188 = vmul.f32 %v2186, 0.5
        %v2189 = vmul.f32 %v2187, 0.5
        %v2190 = vmul.f32 %v2180, %v2188
        %v2191 = vmul.f32 %v2181, %v2189
        %s2192 = scalar_lea.vmem %s5, 80
        %v2193 = vld [vmem:[%s2192] sm:$0xf]
        %v2194 = vld [vmem:[%s2192 + $0x4] sm:$0xf]
        %v2195 = vld [vmem:[%s2192 + $0x8] sm:$0xf]
        %v2196 = vld [vmem:[%s2192 + $0xc] sm:$0xf]
        %v2197 = vpack.c.bf16 %v2191, %v2190
        %s2198 = scalar_lea.vmem %s6, 160
        %v2199 = vld [vmem:[%s2198] sm:$0xff]
        %v2200 = vld [vmem:[%s2198 + $0x8] sm:$0xff]
        %v2201 = vld [vmem:[%s2198 + $0x10] sm:$0xff]
        %v2202 = vld [vmem:[%s2198 + $0x18] sm:$0xff]
        %2204 = vset.pattern.permute.xlu0 0
        %2205 = vperm.xlu0 %2204, %v2199
        %v2206 = vpop.permute.xlu0 %2205
        %2208 = vset.pattern.permute.xlu0 0
        %2209 = vperm.xlu0 %2208, %v2200
        %v2210 = vpop.permute.xlu0 %2209
        %2212 = vset.pattern.permute.xlu0 0
        %2213 = vperm.xlu0 %2212, %v2201
        %v2214 = vpop.permute.xlu0 %2213
        %2217 = vset.pattern.permute.xlu0 0
        %2218 = vperm.xlu0 %2217, %v2202
        %v2219 = vpop.permute.xlu0 %2218
        %v2225 = vunpack.c.l.b16 %v2193
        %v2226 = vunpack.c.l.b16 %v2194
        %v2227 = vunpack.c.l.b16 %v2195
        %v2228 = vunpack.c.l.b16 %v2196
        %v2229 = vpack.c.b16 %v2226, %v2225
        %v2230 = vpack.c.b16 %v2228, %v2227
        %v2232 = vsel %vm504, %v2229, 0
        %v2235 = vsel %vm504, %v2230, 0
        %2237 = vmatprep.subr.bf16.mxu0 0
        %2238 = vmatpush1.bf16.msra.mxu0 %v2197
        %2239 = vmatprep.subr.bf16.mxu0 0
        %2240 = vmatpush1.bf16.msra.mxu0 0
        %2241 = vmatprep.subr.bf16.mxu0 0
        %2242 = vmatpush1.bf16.msra.mxu0 0
        %2243 = vmatprep.subr.bf16.mxu0 0
        %2244 = vmatpush1.bf16.msra.mxu0 0
        %2245 = vmatprep.subr.bf16.mxu0 0
        %2246 = vmatpush1.bf16.msra.mxu0 0
        %2247 = vmatprep.subr.bf16.mxu0 0
        %2248 = vmatpush1.bf16.msra.mxu0 0
        %2249 = vmatprep.subr.bf16.mxu0 0
        %2250 = vmatpush1.bf16.msra.mxu0 0
        %2251 = vmatprep.subr.bf16.mxu0 0
        %2252 = vmatpush1.bf16.msra.mxu0 0
        %2253 = vmatprep.subr.bf16.mxu0 0
        %2254 = vmatpush1.bf16.msra.mxu0 0
        %2255 = vmatprep.subr.bf16.mxu0 0
        %2256 = vmatpush1.bf16.msra.mxu0 0
        %2257 = vmatprep.subr.bf16.mxu0 0
        %2258 = vmatpush1.bf16.msra.mxu0 0
        %2259 = vmatprep.subr.bf16.mxu0 0
        %2260 = vmatpush1.bf16.msra.mxu0 0
        %2261 = vmatprep.subr.bf16.mxu0 0
        %2262 = vmatpush1.bf16.msra.mxu0 0
        %2263 = vmatprep.subr.bf16.mxu0 0
        %2264 = vmatpush1.bf16.msra.mxu0 0
        %2265 = vmatprep.subr.bf16.mxu0 0
        %2266 = vmatpush1.bf16.msra.mxu0 0
        %2267 = vmatprep.subr.bf16.mxu0 0
        %2268 = vmatpush1.bf16.msra.mxu0 0
        %2269 = vmatprep.mubr.bf16.mxu0 0
        %2270 = vmatmul.mubr.bf16.gmra.mrb[0].mxu0 %v2232
        %v2271 = vpop.f32.mrb[0].mxu0
        %v2272 = vpop.f32.mrb[0].mxu0
        %v2273 = vpop.f32.mrb[0].mxu0
        %v2274 = vpop.f32.mrb[0].mxu0
        %2275 = vmatprep.mubr.bf16.mxu0 0
        %2276 = vmatmul.mubr.bf16.gmra.mrb[0].mxu0 %v2235
        %v2277 = vpop.f32.mrb[0].mxu0
        %v2278 = vadd.f32 %v2214, %v2277
        %v2279 = vpop.f32.mrb[0].mxu0
        %v2280 = vpop.f32.mrb[0].mxu0
        %v2281 = vadd.f32 %v2219, %v2280
        %v2282 = vpop.f32.mrb[0].mxu0
        %2283 = vdwg.mxu0
        %v2284 = vadd.f32 %v1985, %v2278
        %v2285 = vadd.f32 %v1986, %v2281
        %v2286 = vmax.f32 %v2284, 0.0
        %v2287 = vmax.f32 %v2285, 0.0
        %v2288 = vld [vmem:[%s7] sm:$0xf]
        %v2289 = vld [vmem:[%s7 + $0x4] sm:$0xf]
        %v2290 = vpack.c.bf16 %v2287, %v2286
        %v2291 = vld [vmem:[%s8] sm:$0xff]
        %v2292 = vld [vmem:[%s8 + $0x8] sm:$0xff]
        %2294 = vset.pattern.permute.xlu0 0
        %2295 = vperm.xlu0 %2294, %v2291
        %v2296 = vpop.permute.xlu0 %2295
        %2299 = vset.pattern.permute.xlu0 0
        %2300 = vperm.xlu0 %2299, %v2292
        %v2301 = vpop.permute.xlu0 %2300
        %v2305 = vunpack.c.l.b16 %v2288
        %v2306 = vunpack.c.l.b16 %v2289
        %v2307 = vpack.c.b16 %v2306, %v2305
        %v2309 = vsel %vm504, %v2307, 0
        %2311 = vmatprep.subr.bf16.mxu0 0
        %2312 = vmatpush1.bf16.msra.mxu0 %v2290
        %2313 = vmatprep.subr.bf16.mxu0 0
        %2314 = vmatpush1.bf16.msra.mxu0 0
        %2315 = vmatprep.subr.bf16.mxu0 0
        %2316 = vmatpush1.bf16.msra.mxu0 0
        %2317 = vmatprep.subr.bf16.mxu0 0
        %2318 = vmatpush1.bf16.msra.mxu0 0
        %2319 = vmatprep.subr.bf16.mxu0 0
        %2320 = vmatpush1.bf16.msra.mxu0 0
        %2321 = vmatprep.subr.bf16.mxu0 0
        %2322 = vmatpush1.bf16.msra.mxu0 0
        %2323 = vmatprep.subr.bf16.mxu0 0
        %2324 = vmatpush1.bf16.msra.mxu0 0
        %2325 = vmatprep.subr.bf16.mxu0 0
        %2326 = vmatpush1.bf16.msra.mxu0 0
        %2327 = vmatprep.subr.bf16.mxu0 0
        %2328 = vmatpush1.bf16.msra.mxu0 0
        %2329 = vmatprep.subr.bf16.mxu0 0
        %2330 = vmatpush1.bf16.msra.mxu0 0
        %2331 = vmatprep.subr.bf16.mxu0 0
        %2332 = vmatpush1.bf16.msra.mxu0 0
        %2333 = vmatprep.subr.bf16.mxu0 0
        %2334 = vmatpush1.bf16.msra.mxu0 0
        %2335 = vmatprep.subr.bf16.mxu0 0
        %2336 = vmatpush1.bf16.msra.mxu0 0
        %2337 = vmatprep.subr.bf16.mxu0 0
        %2338 = vmatpush1.bf16.msra.mxu0 0
        %2339 = vmatprep.subr.bf16.mxu0 0
        %2340 = vmatpush1.bf16.msra.mxu0 0
        %2341 = vmatprep.subr.bf16.mxu0 0
        %2342 = vmatpush1.bf16.msra.mxu0 0
        %2343 = vmatprep.mubr.bf16.mxu0 0
        %2344 = vmatmul.mubr.bf16.gmra.mrb[0].mxu0 %v2309
        %v2345 = vpop.f32.mrb[0].mxu0
        %v2346 = vadd.f32 %v2296, %v2345
        %v2347 = vpop.f32.mrb[0].mxu0
        %v2348 = vpop.f32.mrb[0].mxu0
        %v2349 = vadd.f32 %v2301, %v2348
        %v2350 = vpop.f32.mrb[0].mxu0
        %2351 = vdwg.mxu0
        %v2352 = vmax.f32 %v2346, 0.0
        %v2353 = vmax.f32 %v2349, 0.0
        %v2354 = vld [vmem:[%s9] sm:$0x3]
        %v2355 = vpack.c.bf16 %v2353, %v2352
        %v2356 = vld [vmem:[%s10] sm:$0xf]
        %2358 = vset.pattern.permute.xlu0 0
        %2359 = vperm.xlu0 %2358, %v2356
        %v2360 = vpop.permute.xlu0 %2359
        %v2363 = vsel %vm504, %v2354, 0
        %2365 = vmatprep.subr.bf16.mxu0 0
        %2366 = vmatpush1.bf16.msra.mxu0 %v2355
        %2367 = vmatprep.subr.bf16.mxu0 0
        %2368 = vmatpush1.bf16.msra.mxu0 0
        %2369 = vmatprep.subr.bf16.mxu0 0
        %2370 = vmatpush1.bf16.msra.mxu0 0
        %2371 = vmatprep.subr.bf16.mxu0 0
        %2372 = vmatpush1.bf16.msra.mxu0 0
        %2373 = vmatprep.subr.bf16.mxu0 0
        %2374 = vmatpush1.bf16.msra.mxu0 0
        %2375 = vmatprep.subr.bf16.mxu0 0
        %2376 = vmatpush1.bf16.msra.mxu0 0
        %2377 = vmatprep.subr.bf16.mxu0 0
        %2378 = vmatpush1.bf16.msra.mxu0 0
        %2379 = vmatprep.subr.bf16.mxu0 0
        %2380 = vmatpush1.bf16.msra.mxu0 0
        %2381 = vmatprep.subr.bf16.mxu0 0
        %2382 = vmatpush1.bf16.msra.mxu0 0
        %2383 = vmatprep.subr.bf16.mxu0 0
        %2384 = vmatpush1.bf16.msra.mxu0 0
        %2385 = vmatprep.subr.bf16.mxu0 0
        %2386 = vmatpush1.bf16.msra.mxu0 0
        %2387 = vmatprep.subr.bf16.mxu0 0
        %2388 = vmatpush1.bf16.msra.mxu0 0
        %2389 = vmatprep.subr.bf16.mxu0 0
        %2390 = vmatpush1.bf16.msra.mxu0 0
        %2391 = vmatprep.subr.bf16.mxu0 0
        %2392 = vmatpush1.bf16.msra.mxu0 0
        %2393 = vmatprep.subr.bf16.mxu0 0
        %2394 = vmatpush1.bf16.msra.mxu0 0
        %2395 = vmatprep.subr.bf16.mxu0 0
        %2396 = vmatpush1.bf16.msra.mxu0 0
        %2397 = vmatprep.mubr.bf16.mxu0 0
        %2398 = vmatmul.mubr.bf16.gmra.mrb[0].mxu0 %v2363
        %v2399 = vpop.f32.mrb[0].mxu0
        %v2400 = vadd.f32 %v2360, %v2399
        %v2401 = vpop.f32.mrb[0].mxu0
        %v2402 = vpop.f32.mrb[0].mxu0
        %v2403 = vpop.f32.mrb[0].mxu0
        %2404 = vdwg.mxu0
        %vm2405 = vcmask 125952
        %2406 = vst.msk [vmem:[%s377] sm:$0xf] %vm2405, %v2400
        %s2407 = sand.u32 %s269, 1
        %s2408 = scalar_lea.sflag [#allocation3], %s2407
        %s2409 = sand.u32 %s269, 1
        %s2410 = smul.addr %s2409, 4
        %s2411 = scalar_lea.vmem [#allocation2], %s2410
        // Predicated region
        $region65: #{tpu_custom_call.1} parent=63 // pred_check
          %p2412 = pneg %p279
        $region66: #{tpu_custom_call.1} parent=63 // pred_check_branch
          %2414 = sbr.rel (%p2412) target = $region68
        $region67: #{tpu_custom_call.1} parent=63 // pred_region
          %s2416 = ssub.s32 64, 64
          %2417 = vsyncadd %s2408, %s2416
          %s2418 = smul.addr %s25, 64
          %s2419 = scalar_lea.hbm %s11, %s2418
          %s2421 = sshll.u32 %s2411, 4
          %s2422 = int_to_ptr.vmem [resolvable:$true] %s2421
          %2424 = dma.vmem_to_hbm [thread:$0]  %s2422, 64, %s2419, %s2408
        $region68: #{tpu_custom_call.1} parent=63 // pred_fallthru
          _
      $region64: #{tpu_custom_call.1} parent=5 // pred_fallthru
        _
      %p2425 = scmp.le.s32.totalorder 2, %s20
      // Predicated region
      $region69: #{tpu_custom_call.1} parent=5 // pred_check
        %p2426 = pneg %p2425
      $region70: #{tpu_custom_call.1} parent=5 // pred_check_branch
        %2428 = sbr.rel (%p2426) target = $region72
      $region71: #{tpu_custom_call.1} parent=5 // pred_region
        %s2429 = ssub.s32 %s20, 2
        // Predicated region
        $region73: #{tpu_custom_call.1} parent=71 // pred_check
          %p2430 = pneg %p285
        $region74: #{tpu_custom_call.1} parent=71 // pred_check_branch
          %2432 = sbr.rel (%p2430) target = $region76
        $region75: #{tpu_custom_call.1} parent=71 // pred_region
          %s2433 = sand.u32 %s270, 1
          %s2434 = scalar_lea.sflag [#allocation3], %s2433
          %s2435 = sand.u32 %s270, 1
          %s2436 = smul.addr %s2435, 4
          %s2437 = scalar_lea.vmem [#allocation2], %s2436
          %2438 = dma.done %s2434, 64
        $region76: #{tpu_custom_call.1} parent=71 // pred_fallthru
          _
      $region72: #{tpu_custom_call.1} parent=5 // pred_fallthru
        _
    $region6: #{tpu_custom_call.1} parent=1 // loop_footer
      %s24 = sadd.s32 1, %s20
    $region7: #{tpu_custom_call.1} parent=1 // loop_footer_branch
      %19 = sbr.rel target = $region3
    $region8: #{tpu_custom_call.1} parent=1 // loop_exit
      _
    %2439 = vsyncpa [#allocation3], 1
    %s2440 = scalar_lea.sflag [#allocation3], 1
    %2441 = vsyncpa %s2440, 1

</llo_original>
